<compile_context>
chip_gen: v5e
topology: v5e:2x2
jax: 0.10.0
libtpu: 0.0.40
codegen_flags: <defaults>
</compile_context>

<pallas_src>
import math

import jax
import jax.numpy as jnp
from jax.experimental import pallas as pl
from jax.experimental.pallas import tpu as pltpu

# ---- model config (constructor args of RNN_classifier) ----
DIM_INPUT = 16        # dim_input
N_LSTM_LAYERS = 2     # n_lstm_layers
N_FC_LAYERS = 2       # n_fc_layers
DIM_LSTM_HIDDEN = 32  # dim_lstm_hidden
DIM_FC_HIDDEN = 32    # dim_fc_hidden
DIM_OUTPUT = 2        # dim_output
SEQ = 8               # T  (seq-major input (T, B, dim_input), nn.LSTM default)
BATCH = 2             # B

H = DIM_LSTM_HIDDEN
N_GATES = 4           # PyTorch gate order: i, f, g, o
G = N_GATES * H       # 128 fused gate lanes, layout [i | f | g | o]
BIAS_PAD = 8          # bias rows padded to a sublane multiple inside packed slabs
F32 = jnp.float32


def _sigmoid(x):
    # sigmoid(x) = 0.5*tanh(x/2) + 0.5 : one EUP transcendental + 2 cheap VPU ops,
    # no divide on the serial path and no exp overflow for large-magnitude inputs.
    return 0.5 * jnp.tanh(0.5 * x) + 0.5


def _rotl(x, k):
    # Rotate lanes left by k: result[:, j] = x[:, (j + k) % G].
    # Explicit slice+concat keeps the direction unambiguous; it lowers to cheap lane ops
    # (pltpu.roll would be the single XLU-op equivalent).
    return jnp.concatenate([x[:, k:], x[:, :k]], axis=1)


def _lstm_layer(seq_in, slab_ref, in_rows):
    """One LSTM layer over the whole sequence.

    seq_in:   (T*B, in_rows) value; for layers > 0 the true hidden lives in lanes [0, H)
              and the remaining lanes are inert junk (killed by zero-padded weight rows).
    slab_ref: packed parameter slab:
                rows [0, in_rows)            fused W_ih  (in_rows, 4H)
                rows [in_rows, in_rows+G)    fused W_hh  (4H, 4H), rows >= H are zero
                row  in_rows+G               fused bias  (1, 4H)  (b_ih + b_hh)
    Returns (seq_out (T*B, G) with true h in lanes [0,H), h_n (B,H), c_n (B,H)).
    """
    wih = slab_ref[0:in_rows, :]                       # (in_rows, 128)
    whh = slab_ref[in_rows:in_rows + G, :]             # (128, 128)
    b = slab_ref[in_rows + G:in_rows + G + 1, :]       # (1, 128)

    # Input-side projections for every timestep at once: ONE lane-dense matmul per layer.
    xg_all = jnp.dot(seq_in, wih, preferred_element_type=F32) + b      # (T*B, 128)
    # Pre-split per-timestep slices outside the recurrence (off the dependence chain).
    xg = [xg_all[t * BATCH:(t + 1) * BATCH, :] for t in range(SEQ)]

    h = jnp.zeros((BATCH, G), F32)     # lanes [0, H) carry the true hidden state
    c = jnp.zeros((BATCH, G), F32)     # lanes [0, H) carry the true cell state
    hs = []
    for t in range(SEQ):               # static unroll, T = 8
        # ONE fused recurrent matmul per step (junk lanes of h hit zero weight rows).
        gates = xg[t] + jnp.dot(h, whh, preferred_element_type=F32)    # (B,128) [i|f|g|o]
        s = _sigmoid(gates)            # full-width sigmoid (EUP)
        tg = jnp.tanh(gates)           # full-width tanh (EUP)
        f_al = _rotl(s, H)             # sigmoid(f) -> lanes [0, H)
        g_al = _rotl(tg, 2 * H)        # tanh(g)    -> lanes [0, H)
        o_al = _rotl(s, 3 * H)         # sigmoid(o) -> lanes [0, H)
        c = f_al * c + s * g_al        # lanes [0,H): f*c + i*g   (other lanes: finite junk)
        h = o_al * jnp.tanh(c)         # lanes [0,H): o*tanh(c)   (other lanes bounded by 1)
        hs.append(h)
    seq_out = jnp.concatenate(hs, axis=0)               # (T*B, 128) dense slab, no per-step stores
    return seq_out, h[:, :H], c[:, :H]


def rnn_classifier_kernel(*refs):
    x_ref = refs[0]
    slab_refs = refs[1:1 + N_LSTM_LAYERS]
    fc_ref = refs[1 + N_LSTM_LAYERS]
    logp_ref, hn_ref, cn_ref = refs[2 + N_LSTM_LAYERS:5 + N_LSTM_LAYERS]

    # --- stacked LSTM ---
    seq = x_ref[...]                                     # (T*B, Din)
    h_fin, c_fin = [], []
    for l in range(N_LSTM_LAYERS):
        in_rows = DIM_INPUT if l == 0 else G
        seq, h_l, c_l = _lstm_layer(seq, slab_refs[l], in_rows)
        h_fin.append(h_l)
        c_fin.append(c_l)
    hn_ref[...] = jnp.stack(h_fin, axis=0)               # (layers, B, H), single store
    cn_ref[...] = jnp.stack(c_fin, axis=0)

    # --- FC classifier head, applied to every timestep (M = T*B matmul chain) ---
    W = DIM_FC_HIDDEN
    fw0 = fc_ref[0:G, :]                                 # (128, 32), rows >= H are zero
    fb0 = fc_ref[G:G + 1, :]
    o1 = G + BIAS_PAD
    fw1 = fc_ref[o1:o1 + W, :]                           # (32, 32)
    fb1 = fc_ref[o1 + W:o1 + W + 1, :]
    o2 = o1 + W + BIAS_PAD
    fw2 = fc_ref[o2:o2 + W, :]                           # (32, 32), cols >= n_out are zero
    fb2 = fc_ref[o2 + W:o2 + W + 1, :]

    z = jnp.maximum(jnp.dot(seq, fw0, preferred_element_type=F32) + fb0, 0.0)
    z = jnp.maximum(jnp.dot(z, fw1, preferred_element_type=F32) + fb1, 0.0)
    z = jnp.dot(z, fw2, preferred_element_type=F32) + fb2        # (T*B, 32); cols >= 2 are 0
    z = z[:, :DIM_OUTPUT]                                        # real logits

    # log_softmax over the class dim (dim=2 of the (T, B, n_out) tensor)
    m = jnp.max(z, axis=-1, keepdims=True)
    lse = jnp.log(jnp.sum(jnp.exp(z - m), axis=-1, keepdims=True)) + m
    logp_ref[...] = z - lse                                      # single output store


def _pack_lstm_layer(params, l):
    """Pack one layer's (W_ih, W_hh, b_ih+b_hh) into a single (in_rows+G+8, G) slab."""
    w_ih = params[f"w_ih_{l}"]                           # (4H, in_l) PyTorch layout
    w_hh = params[f"w_hh_{l}"]                           # (4H, H)
    bias = params[f"b_ih_{l}"] + params[f"b_hh_{l}"]     # (4H,)
    if l == 0:
        wih = w_ih.T.astype(F32)                                       # (Din, 4H)
    else:
        wih = jnp.zeros((G, G), F32).at[:H, :].set(w_ih.T)             # rows >= H zero
    whh = jnp.zeros((G, G), F32).at[:H, :].set(w_hh.T)                 # rows >= H zero
    b = jnp.zeros((BIAS_PAD, G), F32).at[0, :].set(bias)
    return jnp.concatenate([wih, whh, b], axis=0)


def _pack_fc(params):
    """Pack the whole FC head into one (216, 32) slab (8-row-aligned sections)."""
    W = DIM_FC_HIDDEN
    fw0 = jnp.zeros((G, W), F32).at[:H, :].set(params["fc_w0"].T)      # rows >= H zero
    fb0 = jnp.zeros((BIAS_PAD, W), F32).at[0, :].set(params["fc_b0"])
    fw1 = params["fc_w1"].T.astype(F32)
    fb1 = jnp.zeros((BIAS_PAD, W), F32).at[0, :].set(params["fc_b1"])
    fw2 = jnp.zeros((W, W), F32).at[:, :DIM_OUTPUT].set(params["fc_w2"].T)
    fb2 = jnp.zeros((BIAS_PAD, W), F32).at[0, :DIM_OUTPUT].set(params["fc_b2"])
    return jnp.concatenate([fw0, fb0, fw1, fb1, fw2, fb2], axis=0)


def rnn_classifier(x, params):
    """x: (T, B, dim_input) seq-major. Returns (log_probs (T,B,out), (h_n, c_n))."""
    T, B, Din = x.shape
    assert (T, B, Din) == (SEQ, BATCH, DIM_INPUT)

    # Four operands total: x + one packed slab per LSTM layer + one FC slab.
    operands = [x.reshape(T * B, Din)]
    operands += [_pack_lstm_layer(params, l) for l in range(N_LSTM_LAYERS)]
    operands.append(_pack_fc(params))

    out_shapes = (
        jax.ShapeDtypeStruct((T * B, DIM_OUTPUT), F32),          # log-probs (flattened)
        jax.ShapeDtypeStruct((N_LSTM_LAYERS, B, H), F32),        # h_n
        jax.ShapeDtypeStruct((N_LSTM_LAYERS, B, H), F32),        # c_n
    )

    def full_spec(shape):
        nd = len(shape)
        return pl.BlockSpec(shape, lambda i, _nd=nd: (0,) * _nd)

    in_specs = [full_spec(a.shape) for a in operands]
    out_specs = [full_spec(s.shape) for s in out_shapes]

    # tiny advisory cost estimate so XLA doesn't over-serialize around this micro-kernel
    flops = 0
    in_rows = Din
    for _ in range(N_LSTM_LAYERS):
        flops += 2 * (T * B) * in_rows * G            # fused input-side projection
        flops += 2 * T * B * G * G                    # fused recurrent matmuls
        in_rows = G
    flops += 2 * (T * B) * (G * DIM_FC_HIDDEN
                            + DIM_FC_HIDDEN * DIM_FC_HIDDEN
                            + DIM_FC_HIDDEN * DIM_FC_HIDDEN)
    transcendentals = N_LSTM_LAYERS * SEQ * 3 * B * G + T * B * (DIM_OUTPUT + 1)
    bytes_accessed = 4 * (sum(math.prod(a.shape) for a in operands)
                          + sum(math.prod(s.shape) for s in out_shapes))

    logp_flat, h_n, c_n = pl.pallas_call(
        rnn_classifier_kernel,
        out_shape=out_shapes,
        grid_spec=pltpu.PrefetchScalarGridSpec(
            num_scalar_prefetch=0,
            grid=(1,),
            in_specs=in_specs,
            out_specs=out_specs,
        ),
        compiler_params=pltpu.CompilerParams(dimension_semantics=("arbitrary",)),
        cost_estimate=pl.CostEstimate(flops=int(flops),
                                      transcendentals=int(transcendentals),
                                      bytes_accessed=int(bytes_accessed)),
    )(*operands)

    return logp_flat.reshape(T, B, DIM_OUTPUT), (h_n, c_n)


def reference_forward(x, params):
    """Pure-JAX mirror of the PyTorch forward (LSTM + FC + log_softmax), for verification."""
    T, B, _ = x.shape
    inp = x
    h_last, c_last = [], []
    for l in range(N_LSTM_LAYERS):
        w_ih = params[f"w_ih_{l}"]
        w_hh = params[f"w_hh_{l}"]
        b = params[f"b_ih_{l}"] + params[f"b_hh_{l}"]
        h = jnp.zeros((B, H), F32)
        c = jnp.zeros((B, H), F32)
        outs = []
        for t in range(T):
            gates = inp[t] @ w_ih.T + h @ w_hh.T + b                  # (B, 4H)
            i = jax.nn.sigmoid(gates[:, 0:H])
            f = jax.nn.sigmoid(gates[:, H:2 * H])
            g = jnp.tanh(gates[:, 2 * H:3 * H])
            o = jax.nn.sigmoid(gates[:, 3 * H:4 * H])
            c = f * c + i * g
            h = o * jnp.tanh(c)
            outs.append(h)
        inp = jnp.stack(outs, axis=0)                                 # (T, B, H)
        h_last.append(h)
        c_last.append(c)
    z = jax.nn.relu(inp @ params["fc_w0"].T + params["fc_b0"])
    z = jax.nn.relu(z @ params["fc_w1"].T + params["fc_b1"])
    z = z @ params["fc_w2"].T + params["fc_b2"]
    return jax.nn.log_softmax(z, axis=2), (jnp.stack(h_last, 0), jnp.stack(c_last, 0))


def init_params(key):
    ks = iter(jax.random.split(key, 64))

    def w(shape, scale=0.1):
        return jax.random.normal(next(ks), shape, F32) * scale

    p = {}
    in_sz = DIM_INPUT
    for l in range(N_LSTM_LAYERS):
        p[f"w_ih_{l}"] = w((4 * H, in_sz))
        p[f"w_hh_{l}"] = w((4 * H, H))
        p[f"b_ih_{l}"] = w((4 * H,))
        p[f"b_hh_{l}"] = w((4 * H,))
        in_sz = H
    p["fc_w0"] = w((DIM_FC_HIDDEN, H));             p["fc_b0"] = w((DIM_FC_HIDDEN,))
    p["fc_w1"] = w((DIM_FC_HIDDEN, DIM_FC_HIDDEN)); p["fc_b1"] = w((DIM_FC_HIDDEN,))
    p["fc_w2"] = w((DIM_OUTPUT, DIM_FC_HIDDEN));    p["fc_b2"] = w((DIM_OUTPUT,))
    return p


if __name__ == "__main__":
    key = jax.random.PRNGKey(0)
    pkey, xkey = jax.random.split(key)
    params = init_params(pkey)
    x = jax.random.normal(xkey, (SEQ, BATCH, DIM_INPUT), F32)

    (logp, (h_n, c_n)) = jax.block_until_ready(rnn_classifier(x, params))
    (ref_logp, (ref_h, ref_c)) = jax.block_until_ready(reference_forward(x, params))

    assert logp.shape == (SEQ, BATCH, DIM_OUTPUT), logp.shape
    assert h_n.shape == (N_LSTM_LAYERS, BATCH, H), h_n.shape
    assert c_n.shape == (N_LSTM_LAYERS, BATCH, H), c_n.shape
    assert bool(jnp.all(jnp.isfinite(logp)))
    assert bool(jnp.allclose(logp, ref_logp, atol=1e-3, rtol=1e-3)), (logp, ref_logp)
    assert bool(jnp.allclose(h_n, ref_h, atol=1e-3, rtol=1e-3))
    assert bool(jnp.allclose(c_n, ref_c, atol=1e-3, rtol=1e-3))
    print("KERNEL_OK")
</pallas_src>

<mosaic_0001>
module attributes {stable_mosaic.version = 11 : i64} {
  func.func @rnn_classifier_kernel(%arg0: i32, %arg1: memref<16x16xf32, #tpu.memory_space<vmem>>, %arg2: memref<152x128xf32, #tpu.memory_space<vmem>>, %arg3: memref<264x128xf32, #tpu.memory_space<vmem>>, %arg4: memref<216x32xf32, #tpu.memory_space<vmem>>, %arg5: memref<16x2xf32, #tpu.memory_space<vmem>>, %arg6: memref<2x2x32xf32, #tpu.memory_space<vmem>>, %arg7: memref<2x2x32xf32, #tpu.memory_space<vmem>>) attributes {dimension_semantics = [#tpu.dimension_semantics<arbitrary>], iteration_bounds = array<i64: 1>, scalar_prefetch = 0 : i64, scratch_operands = 0 : i64, tpu.core_type = #tpu.core_type<tc>, window_params = [{pipeline_mode = #tpu.pipeline_mode<synchronous>, transform_indices = @transform_0, window_bounds = array<i64: 16, 16>}, {pipeline_mode = #tpu.pipeline_mode<synchronous>, transform_indices = @transform_1, window_bounds = array<i64: 152, 128>}, {pipeline_mode = #tpu.pipeline_mode<synchronous>, transform_indices = @transform_2, window_bounds = array<i64: 264, 128>}, {pipeline_mode = #tpu.pipeline_mode<synchronous>, transform_indices = @transform_3, window_bounds = array<i64: 216, 32>}, {pipeline_mode = #tpu.pipeline_mode<synchronous>, transform_indices = @transform_4, window_bounds = array<i64: 16, 2>}, {pipeline_mode = #tpu.pipeline_mode<synchronous>, transform_indices = @transform_5, window_bounds = array<i64: 2, 2, 32>}, {pipeline_mode = #tpu.pipeline_mode<synchronous>, transform_indices = @transform_6, window_bounds = array<i64: 2, 2, 32>}]} {
    %c0 = arith.constant 0 : index
    %c0_0 = arith.constant 0 : index
    %0 = vector.load %arg1[%c0, %c0_0] : memref<16x16xf32, #tpu.memory_space<vmem>>, vector<16x16xf32>
    %c0_1 = arith.constant 0 : index
    %c0_2 = arith.constant 0 : index
    %1 = vector.load %arg2[%c0_1, %c0_2] : memref<152x128xf32, #tpu.memory_space<vmem>>, vector<16x128xf32>
    %c16 = arith.constant 16 : index
    %c0_3 = arith.constant 0 : index
    %2 = vector.load %arg2[%c16, %c0_3] : memref<152x128xf32, #tpu.memory_space<vmem>>, vector<128x128xf32>
    %c144 = arith.constant 144 : index
    %c0_4 = arith.constant 0 : index
    %3 = vector.load %arg2[%c144, %c0_4] : memref<152x128xf32, #tpu.memory_space<vmem>>, vector<1x128xf32>
    %cst = arith.constant dense<0.000000e+00> : vector<16x128xf32>
    %4 = tpu.matmul %0, %1, %cst {dimension_numbers = #tpu.dot_dimension_numbers<[1], [0], [0], [1], [0, 0, 1, 1], [], []>} : vector<16x16xf32>, vector<16x128xf32>, vector<16x128xf32> -> vector<16x128xf32>
    %5 = vector.broadcast %3 : vector<1x128xf32> to vector<16x128xf32>
    %6 = arith.addf %4, %5 : vector<16x128xf32>
    %7 = vector.extract_strided_slice %6 {offsets = [0, 0], sizes = [2, 128], strides = [1, 1]} : vector<16x128xf32> to vector<2x128xf32>
    %8 = vector.extract_strided_slice %6 {offsets = [2, 0], sizes = [2, 128], strides = [1, 1]} : vector<16x128xf32> to vector<2x128xf32>
    %9 = vector.extract_strided_slice %6 {offsets = [4, 0], sizes = [2, 128], strides = [1, 1]} : vector<16x128xf32> to vector<2x128xf32>
    %10 = vector.extract_strided_slice %6 {offsets = [6, 0], sizes = [2, 128], strides = [1, 1]} : vector<16x128xf32> to vector<2x128xf32>
    %11 = vector.extract_strided_slice %6 {offsets = [8, 0], sizes = [2, 128], strides = [1, 1]} : vector<16x128xf32> to vector<2x128xf32>
    %12 = vector.extract_strided_slice %6 {offsets = [10, 0], sizes = [2, 128], strides = [1, 1]} : vector<16x128xf32> to vector<2x128xf32>
    %13 = vector.extract_strided_slice %6 {offsets = [12, 0], sizes = [2, 128], strides = [1, 1]} : vector<16x128xf32> to vector<2x128xf32>
    %14 = vector.extract_strided_slice %6 {offsets = [14, 0], sizes = [2, 128], strides = [1, 1]} : vector<16x128xf32> to vector<2x128xf32>
    %cst_5 = arith.constant 0.000000e+00 : f32
    %15 = vector.broadcast %cst_5 : f32 to vector<2x128xf32>
    %cst_6 = arith.constant 0.000000e+00 : f32
    %16 = vector.broadcast %cst_6 : f32 to vector<2x128xf32>
    %cst_7 = arith.constant dense<0.000000e+00> : vector<2x128xf32>
    %17 = tpu.matmul %15, %2, %cst_7 {dimension_numbers = #tpu.dot_dimension_numbers<[1], [0], [0], [1], [0, 0, 1, 1], [], []>} : vector<2x128xf32>, vector<128x128xf32>, vector<2x128xf32> -> vector<2x128xf32>
    %18 = arith.addf %7, %17 : vector<2x128xf32>
    %cst_8 = arith.constant 5.000000e-01 : f32
    %19 = vector.broadcast %cst_8 : f32 to vector<2x128xf32>
    %20 = arith.mulf %19, %18 : vector<2x128xf32>
    %21 = math.tanh %20 : vector<2x128xf32>
    %cst_9 = arith.constant 5.000000e-01 : f32
    %22 = vector.broadcast %cst_9 : f32 to vector<2x128xf32>
    %23 = arith.mulf %22, %21 : vector<2x128xf32>
    %cst_10 = arith.constant 5.000000e-01 : f32
    %24 = vector.broadcast %cst_10 : f32 to vector<2x128xf32>
    %25 = arith.addf %23, %24 : vector<2x128xf32>
    %26 = math.tanh %18 : vector<2x128xf32>
    %27 = vector.extract_strided_slice %25 {offsets = [0, 32], sizes = [2, 96], strides = [1, 1]} : vector<2x128xf32> to vector<2x96xf32>
    %28 = vector.extract_strided_slice %25 {offsets = [0, 0], sizes = [2, 32], strides = [1, 1]} : vector<2x128xf32> to vector<2x32xf32>
    %29 = tpu.concatenate %27, %28 in 1 : vector<2x96xf32>, vector<2x32xf32> -> vector<2x128xf32>
    %30 = vector.extract_strided_slice %26 {offsets = [0, 64], sizes = [2, 64], strides = [1, 1]} : vector<2x128xf32> to vector<2x64xf32>
    %31 = vector.extract_strided_slice %26 {offsets = [0, 0], sizes = [2, 64], strides = [1, 1]} : vector<2x128xf32> to vector<2x64xf32>
    %32 = tpu.concatenate %30, %31 in 1 : vector<2x64xf32>, vector<2x64xf32> -> vector<2x128xf32>
    %33 = vector.extract_strided_slice %25 {offsets = [0, 96], sizes = [2, 32], strides = [1, 1]} : vector<2x128xf32> to vector<2x32xf32>
    %34 = vector.extract_strided_slice %25 {offsets = [0, 0], sizes = [2, 96], strides = [1, 1]} : vector<2x128xf32> to vector<2x96xf32>
    %35 = tpu.concatenate %33, %34 in 1 : vector<2x32xf32>, vector<2x96xf32> -> vector<2x128xf32>
    %36 = arith.mulf %29, %16 : vector<2x128xf32>
    %37 = arith.mulf %25, %32 : vector<2x128xf32>
    %38 = arith.addf %36, %37 : vector<2x128xf32>
    %39 = math.tanh %38 : vector<2x128xf32>
    %40 = arith.mulf %35, %39 : vector<2x128xf32>
    %cst_11 = arith.constant dense<0.000000e+00> : vector<2x128xf32>
    %41 = tpu.matmul %40, %2, %cst_11 {dimension_numbers = #tpu.dot_dimension_numbers<[1], [0], [0], [1], [0, 0, 1, 1], [], []>} : vector<2x128xf32>, vector<128x128xf32>, vector<2x128xf32> -> vector<2x128xf32>
    %42 = arith.addf %8, %41 : vector<2x128xf32>
    %cst_12 = arith.constant 5.000000e-01 : f32
    %43 = vector.broadcast %cst_12 : f32 to vector<2x128xf32>
    %44 = arith.mulf %43, %42 : vector<2x128xf32>
    %45 = math.tanh %44 : vector<2x128xf32>
    %cst_13 = arith.constant 5.000000e-01 : f32
    %46 = vector.broadcast %cst_13 : f32 to vector<2x128xf32>
    %47 = arith.mulf %46, %45 : vector<2x128xf32>
    %cst_14 = arith.constant 5.000000e-01 : f32
    %48 = vector.broadcast %cst_14 : f32 to vector<2x128xf32>
    %49 = arith.addf %47, %48 : vector<2x128xf32>
    %50 = math.tanh %42 : vector<2x128xf32>
    %51 = vector.extract_strided_slice %49 {offsets = [0, 32], sizes = [2, 96], strides = [1, 1]} : vector<2x128xf32> to vector<2x96xf32>
    %52 = vector.extract_strided_slice %49 {offsets = [0, 0], sizes = [2, 32], strides = [1, 1]} : vector<2x128xf32> to vector<2x32xf32>
    %53 = tpu.concatenate %51, %52 in 1 : vector<2x96xf32>, vector<2x32xf32> -> vector<2x128xf32>
    %54 = vector.extract_strided_slice %50 {offsets = [0, 64], sizes = [2, 64], strides = [1, 1]} : vector<2x128xf32> to vector<2x64xf32>
    %55 = vector.extract_strided_slice %50 {offsets = [0, 0], sizes = [2, 64], strides = [1, 1]} : vector<2x128xf32> to vector<2x64xf32>
    %56 = tpu.concatenate %54, %55 in 1 : vector<2x64xf32>, vector<2x64xf32> -> vector<2x128xf32>
    %57 = vector.extract_strided_slice %49 {offsets = [0, 96], sizes = [2, 32], strides = [1, 1]} : vector<2x128xf32> to vector<2x32xf32>
    %58 = vector.extract_strided_slice %49 {offsets = [0, 0], sizes = [2, 96], strides = [1, 1]} : vector<2x128xf32> to vector<2x96xf32>
    %59 = tpu.concatenate %57, %58 in 1 : vector<2x32xf32>, vector<2x96xf32> -> vector<2x128xf32>
    %60 = arith.mulf %53, %38 : vector<2x128xf32>
    %61 = arith.mulf %49, %56 : vector<2x128xf32>
    %62 = arith.addf %60, %61 : vector<2x128xf32>
    %63 = math.tanh %62 : vector<2x128xf32>
    %64 = arith.mulf %59, %63 : vector<2x128xf32>
    %cst_15 = arith.constant dense<0.000000e+00> : vector<2x128xf32>
    %65 = tpu.matmul %64, %2, %cst_15 {dimension_numbers = #tpu.dot_dimension_numbers<[1], [0], [0], [1], [0, 0, 1, 1], [], []>} : vector<2x128xf32>, vector<128x128xf32>, vector<2x128xf32> -> vector<2x128xf32>
    %66 = arith.addf %9, %65 : vector<2x128xf32>
    %cst_16 = arith.constant 5.000000e-01 : f32
    %67 = vector.broadcast %cst_16 : f32 to vector<2x128xf32>
    %68 = arith.mulf %67, %66 : vector<2x128xf32>
    %69 = math.tanh %68 : vector<2x128xf32>
    %cst_17 = arith.constant 5.000000e-01 : f32
    %70 = vector.broadcast %cst_17 : f32 to vector<2x128xf32>
    %71 = arith.mulf %70, %69 : vector<2x128xf32>
    %cst_18 = arith.constant 5.000000e-01 : f32
    %72 = vector.broadcast %cst_18 : f32 to vector<2x128xf32>
    %73 = arith.addf %71, %72 : vector<2x128xf32>
    %74 = math.tanh %66 : vector<2x128xf32>
    %75 = vector.extract_strided_slice %73 {offsets = [0, 32], sizes = [2, 96], strides = [1, 1]} : vector<2x128xf32> to vector<2x96xf32>
    %76 = vector.extract_strided_slice %73 {offsets = [0, 0], sizes = [2, 32], strides = [1, 1]} : vector<2x128xf32> to vector<2x32xf32>
    %77 = tpu.concatenate %75, %76 in 1 : vector<2x96xf32>, vector<2x32xf32> -> vector<2x128xf32>
    %78 = vector.extract_strided_slice %74 {offsets = [0, 64], sizes = [2, 64], strides = [1, 1]} : vector<2x128xf32> to vector<2x64xf32>
    %79 = vector.extract_strided_slice %74 {offsets = [0, 0], sizes = [2, 64], strides = [1, 1]} : vector<2x128xf32> to vector<2x64xf32>
    %80 = tpu.concatenate %78, %79 in 1 : vector<2x64xf32>, vector<2x64xf32> -> vector<2x128xf32>
    %81 = vector.extract_strided_slice %73 {offsets = [0, 96], sizes = [2, 32], strides = [1, 1]} : vector<2x128xf32> to vector<2x32xf32>
    %82 = vector.extract_strided_slice %73 {offsets = [0, 0], sizes = [2, 96], strides = [1, 1]} : vector<2x128xf32> to vector<2x96xf32>
    %83 = tpu.concatenate %81, %82 in 1 : vector<2x32xf32>, vector<2x96xf32> -> vector<2x128xf32>
    %84 = arith.mulf %77, %62 : vector<2x128xf32>
    %85 = arith.mulf %73, %80 : vector<2x128xf32>
    %86 = arith.addf %84, %85 : vector<2x128xf32>
    %87 = math.tanh %86 : vector<2x128xf32>
    %88 = arith.mulf %83, %87 : vector<2x128xf32>
    %cst_19 = arith.constant dense<0.000000e+00> : vector<2x128xf32>
    %89 = tpu.matmul %88, %2, %cst_19 {dimension_numbers = #tpu.dot_dimension_numbers<[1], [0], [0], [1], [0, 0, 1, 1], [], []>} : vector<2x128xf32>, vector<128x128xf32>, vector<2x128xf32> -> vector<2x128xf32>
    %90 = arith.addf %10, %89 : vector<2x128xf32>
    %cst_20 = arith.constant 5.000000e-01 : f32
    %91 = vector.broadcast %cst_20 : f32 to vector<2x128xf32>
    %92 = arith.mulf %91, %90 : vector<2x128xf32>
    %93 = math.tanh %92 : vector<2x128xf32>
    %cst_21 = arith.constant 5.000000e-01 : f32
    %94 = vector.broadcast %cst_21 : f32 to vector<2x128xf32>
    %95 = arith.mulf %94, %93 : vector<2x128xf32>
    %cst_22 = arith.constant 5.000000e-01 : f32
    %96 = vector.broadcast %cst_22 : f32 to vector<2x128xf32>
    %97 = arith.addf %95, %96 : vector<2x128xf32>
    %98 = math.tanh %90 : vector<2x128xf32>
    %99 = vector.extract_strided_slice %97 {offsets = [0, 32], sizes = [2, 96], strides = [1, 1]} : vector<2x128xf32> to vector<2x96xf32>
    %100 = vector.extract_strided_slice %97 {offsets = [0, 0], sizes = [2, 32], strides = [1, 1]} : vector<2x128xf32> to vector<2x32xf32>
    %101 = tpu.concatenate %99, %100 in 1 : vector<2x96xf32>, vector<2x32xf32> -> vector<2x128xf32>
    %102 = vector.extract_strided_slice %98 {offsets = [0, 64], sizes = [2, 64], strides = [1, 1]} : vector<2x128xf32> to vector<2x64xf32>
    %103 = vector.extract_strided_slice %98 {offsets = [0, 0], sizes = [2, 64], strides = [1, 1]} : vector<2x128xf32> to vector<2x64xf32>
    %104 = tpu.concatenate %102, %103 in 1 : vector<2x64xf32>, vector<2x64xf32> -> vector<2x128xf32>
    %105 = vector.extract_strided_slice %97 {offsets = [0, 96], sizes = [2, 32], strides = [1, 1]} : vector<2x128xf32> to vector<2x32xf32>
    %106 = vector.extract_strided_slice %97 {offsets = [0, 0], sizes = [2, 96], strides = [1, 1]} : vector<2x128xf32> to vector<2x96xf32>
    %107 = tpu.concatenate %105, %106 in 1 : vector<2x32xf32>, vector<2x96xf32> -> vector<2x128xf32>
    %108 = arith.mulf %101, %86 : vector<2x128xf32>
    %109 = arith.mulf %97, %104 : vector<2x128xf32>
    %110 = arith.addf %108, %109 : vector<2x128xf32>
    %111 = math.tanh %110 : vector<2x128xf32>
    %112 = arith.mulf %107, %111 : vector<2x128xf32>
    %cst_23 = arith.constant dense<0.000000e+00> : vector<2x128xf32>
    %113 = tpu.matmul %112, %2, %cst_23 {dimension_numbers = #tpu.dot_dimension_numbers<[1], [0], [0], [1], [0, 0, 1, 1], [], []>} : vector<2x128xf32>, vector<128x128xf32>, vector<2x128xf32> -> vector<2x128xf32>
    %114 = arith.addf %11, %113 : vector<2x128xf32>
    %cst_24 = arith.constant 5.000000e-01 : f32
    %115 = vector.broadcast %cst_24 : f32 to vector<2x128xf32>
    %116 = arith.mulf %115, %114 : vector<2x128xf32>
    %117 = math.tanh %116 : vector<2x128xf32>
    %cst_25 = arith.constant 5.000000e-01 : f32
    %118 = vector.broadcast %cst_25 : f32 to vector<2x128xf32>
    %119 = arith.mulf %118, %117 : vector<2x128xf32>
    %cst_26 = arith.constant 5.000000e-01 : f32
    %120 = vector.broadcast %cst_26 : f32 to vector<2x128xf32>
    %121 = arith.addf %119, %120 : vector<2x128xf32>
    %122 = math.tanh %114 : vector<2x128xf32>
    %123 = vector.extract_strided_slice %121 {offsets = [0, 32], sizes = [2, 96], strides = [1, 1]} : vector<2x128xf32> to vector<2x96xf32>
    %124 = vector.extract_strided_slice %121 {offsets = [0, 0], sizes = [2, 32], strides = [1, 1]} : vector<2x128xf32> to vector<2x32xf32>
    %125 = tpu.concatenate %123, %124 in 1 : vector<2x96xf32>, vector<2x32xf32> -> vector<2x128xf32>
    %126 = vector.extract_strided_slice %122 {offsets = [0, 64], sizes = [2, 64], strides = [1, 1]} : vector<2x128xf32> to vector<2x64xf32>
    %127 = vector.extract_strided_slice %122 {offsets = [0, 0], sizes = [2, 64], strides = [1, 1]} : vector<2x128xf32> to vector<2x64xf32>
    %128 = tpu.concatenate %126, %127 in 1 : vector<2x64xf32>, vector<2x64xf32> -> vector<2x128xf32>
    %129 = vector.extract_strided_slice %121 {offsets = [0, 96], sizes = [2, 32], strides = [1, 1]} : vector<2x128xf32> to vector<2x32xf32>
    %130 = vector.extract_strided_slice %121 {offsets = [0, 0], sizes = [2, 96], strides = [1, 1]} : vector<2x128xf32> to vector<2x96xf32>
    %131 = tpu.concatenate %129, %130 in 1 : vector<2x32xf32>, vector<2x96xf32> -> vector<2x128xf32>
    %132 = arith.mulf %125, %110 : vector<2x128xf32>
    %133 = arith.mulf %121, %128 : vector<2x128xf32>
    %134 = arith.addf %132, %133 : vector<2x128xf32>
    %135 = math.tanh %134 : vector<2x128xf32>
    %136 = arith.mulf %131, %135 : vector<2x128xf32>
    %cst_27 = arith.constant dense<0.000000e+00> : vector<2x128xf32>
    %137 = tpu.matmul %136, %2, %cst_27 {dimension_numbers = #tpu.dot_dimension_numbers<[1], [0], [0], [1], [0, 0, 1, 1], [], []>} : vector<2x128xf32>, vector<128x128xf32>, vector<2x128xf32> -> vector<2x128xf32>
    %138 = arith.addf %12, %137 : vector<2x128xf32>
    %cst_28 = arith.constant 5.000000e-01 : f32
    %139 = vector.broadcast %cst_28 : f32 to vector<2x128xf32>
    %140 = arith.mulf %139, %138 : vector<2x128xf32>
    %141 = math.tanh %140 : vector<2x128xf32>
    %cst_29 = arith.constant 5.000000e-01 : f32
    %142 = vector.broadcast %cst_29 : f32 to vector<2x128xf32>
    %143 = arith.mulf %142, %141 : vector<2x128xf32>
    %cst_30 = arith.constant 5.000000e-01 : f32
    %144 = vector.broadcast %cst_30 : f32 to vector<2x128xf32>
    %145 = arith.addf %143, %144 : vector<2x128xf32>
    %146 = math.tanh %138 : vector<2x128xf32>
    %147 = vector.extract_strided_slice %145 {offsets = [0, 32], sizes = [2, 96], strides = [1, 1]} : vector<2x128xf32> to vector<2x96xf32>
    %148 = vector.extract_strided_slice %145 {offsets = [0, 0], sizes = [2, 32], strides = [1, 1]} : vector<2x128xf32> to vector<2x32xf32>
    %149 = tpu.concatenate %147, %148 in 1 : vector<2x96xf32>, vector<2x32xf32> -> vector<2x128xf32>
    %150 = vector.extract_strided_slice %146 {offsets = [0, 64], sizes = [2, 64], strides = [1, 1]} : vector<2x128xf32> to vector<2x64xf32>
    %151 = vector.extract_strided_slice %146 {offsets = [0, 0], sizes = [2, 64], strides = [1, 1]} : vector<2x128xf32> to vector<2x64xf32>
    %152 = tpu.concatenate %150, %151 in 1 : vector<2x64xf32>, vector<2x64xf32> -> vector<2x128xf32>
    %153 = vector.extract_strided_slice %145 {offsets = [0, 96], sizes = [2, 32], strides = [1, 1]} : vector<2x128xf32> to vector<2x32xf32>
    %154 = vector.extract_strided_slice %145 {offsets = [0, 0], sizes = [2, 96], strides = [1, 1]} : vector<2x128xf32> to vector<2x96xf32>
    %155 = tpu.concatenate %153, %154 in 1 : vector<2x32xf32>, vector<2x96xf32> -> vector<2x128xf32>
    %156 = arith.mulf %149, %134 : vector<2x128xf32>
    %157 = arith.mulf %145, %152 : vector<2x128xf32>
    %158 = arith.addf %156, %157 : vector<2x128xf32>
    %159 = math.tanh %158 : vector<2x128xf32>
    %160 = arith.mulf %155, %159 : vector<2x128xf32>
    %cst_31 = arith.constant dense<0.000000e+00> : vector<2x128xf32>
    %161 = tpu.matmul %160, %2, %cst_31 {dimension_numbers = #tpu.dot_dimension_numbers<[1], [0], [0], [1], [0, 0, 1, 1], [], []>} : vector<2x128xf32>, vector<128x128xf32>, vector<2x128xf32> -> vector<2x128xf32>
    %162 = arith.addf %13, %161 : vector<2x128xf32>
    %cst_32 = arith.constant 5.000000e-01 : f32
    %163 = vector.broadcast %cst_32 : f32 to vector<2x128xf32>
    %164 = arith.mulf %163, %162 : vector<2x128xf32>
    %165 = math.tanh %164 : vector<2x128xf32>
    %cst_33 = arith.constant 5.000000e-01 : f32
    %166 = vector.broadcast %cst_33 : f32 to vector<2x128xf32>
    %167 = arith.mulf %166, %165 : vector<2x128xf32>
    %cst_34 = arith.constant 5.000000e-01 : f32
    %168 = vector.broadcast %cst_34 : f32 to vector<2x128xf32>
    %169 = arith.addf %167, %168 : vector<2x128xf32>
    %170 = math.tanh %162 : vector<2x128xf32>
    %171 = vector.extract_strided_slice %169 {offsets = [0, 32], sizes = [2, 96], strides = [1, 1]} : vector<2x128xf32> to vector<2x96xf32>
    %172 = vector.extract_strided_slice %169 {offsets = [0, 0], sizes = [2, 32], strides = [1, 1]} : vector<2x128xf32> to vector<2x32xf32>
    %173 = tpu.concatenate %171, %172 in 1 : vector<2x96xf32>, vector<2x32xf32> -> vector<2x128xf32>
    %174 = vector.extract_strided_slice %170 {offsets = [0, 64], sizes = [2, 64], strides = [1, 1]} : vector<2x128xf32> to vector<2x64xf32>
    %175 = vector.extract_strided_slice %170 {offsets = [0, 0], sizes = [2, 64], strides = [1, 1]} : vector<2x128xf32> to vector<2x64xf32>
    %176 = tpu.concatenate %174, %175 in 1 : vector<2x64xf32>, vector<2x64xf32> -> vector<2x128xf32>
    %177 = vector.extract_strided_slice %169 {offsets = [0, 96], sizes = [2, 32], strides = [1, 1]} : vector<2x128xf32> to vector<2x32xf32>
    %178 = vector.extract_strided_slice %169 {offsets = [0, 0], sizes = [2, 96], strides = [1, 1]} : vector<2x128xf32> to vector<2x96xf32>
    %179 = tpu.concatenate %177, %178 in 1 : vector<2x32xf32>, vector<2x96xf32> -> vector<2x128xf32>
    %180 = arith.mulf %173, %158 : vector<2x128xf32>
    %181 = arith.mulf %169, %176 : vector<2x128xf32>
    %182 = arith.addf %180, %181 : vector<2x128xf32>
    %183 = math.tanh %182 : vector<2x128xf32>
    %184 = arith.mulf %179, %183 : vector<2x128xf32>
    %cst_35 = arith.constant dense<0.000000e+00> : vector<2x128xf32>
    %185 = tpu.matmul %184, %2, %cst_35 {dimension_numbers = #tpu.dot_dimension_numbers<[1], [0], [0], [1], [0, 0, 1, 1], [], []>} : vector<2x128xf32>, vector<128x128xf32>, vector<2x128xf32> -> vector<2x128xf32>
    %186 = arith.addf %14, %185 : vector<2x128xf32>
    %cst_36 = arith.constant 5.000000e-01 : f32
    %187 = vector.broadcast %cst_36 : f32 to vector<2x128xf32>
    %188 = arith.mulf %187, %186 : vector<2x128xf32>
    %189 = math.tanh %188 : vector<2x128xf32>
    %cst_37 = arith.constant 5.000000e-01 : f32
    %190 = vector.broadcast %cst_37 : f32 to vector<2x128xf32>
    %191 = arith.mulf %190, %189 : vector<2x128xf32>
    %cst_38 = arith.constant 5.000000e-01 : f32
    %192 = vector.broadcast %cst_38 : f32 to vector<2x128xf32>
    %193 = arith.addf %191, %192 : vector<2x128xf32>
    %194 = math.tanh %186 : vector<2x128xf32>
    %195 = vector.extract_strided_slice %193 {offsets = [0, 32], sizes = [2, 96], strides = [1, 1]} : vector<2x128xf32> to vector<2x96xf32>
    %196 = vector.extract_strided_slice %193 {offsets = [0, 0], sizes = [2, 32], strides = [1, 1]} : vector<2x128xf32> to vector<2x32xf32>
    %197 = tpu.concatenate %195, %196 in 1 : vector<2x96xf32>, vector<2x32xf32> -> vector<2x128xf32>
    %198 = vector.extract_strided_slice %194 {offsets = [0, 64], sizes = [2, 64], strides = [1, 1]} : vector<2x128xf32> to vector<2x64xf32>
    %199 = vector.extract_strided_slice %194 {offsets = [0, 0], sizes = [2, 64], strides = [1, 1]} : vector<2x128xf32> to vector<2x64xf32>
    %200 = tpu.concatenate %198, %199 in 1 : vector<2x64xf32>, vector<2x64xf32> -> vector<2x128xf32>
    %201 = vector.extract_strided_slice %193 {offsets = [0, 96], sizes = [2, 32], strides = [1, 1]} : vector<2x128xf32> to vector<2x32xf32>
    %202 = vector.extract_strided_slice %193 {offsets = [0, 0], sizes = [2, 96], strides = [1, 1]} : vector<2x128xf32> to vector<2x96xf32>
    %203 = tpu.concatenate %201, %202 in 1 : vector<2x32xf32>, vector<2x96xf32> -> vector<2x128xf32>
    %204 = arith.mulf %197, %182 : vector<2x128xf32>
    %205 = arith.mulf %193, %200 : vector<2x128xf32>
    %206 = arith.addf %204, %205 : vector<2x128xf32>
    %207 = math.tanh %206 : vector<2x128xf32>
    %208 = arith.mulf %203, %207 : vector<2x128xf32>
    %209 = tpu.concatenate %40, %64, %88, %112, %136, %160, %184, %208 in 0 : vector<2x128xf32>, vector<2x128xf32>, vector<2x128xf32>, vector<2x128xf32>, vector<2x128xf32>, vector<2x128xf32>, vector<2x128xf32>, vector<2x128xf32> -> vector<16x128xf32>
    %210 = vector.extract_strided_slice %208 {offsets = [0, 0], sizes = [2, 32], strides = [1, 1]} : vector<2x128xf32> to vector<2x32xf32>
    %211 = vector.extract_strided_slice %206 {offsets = [0, 0], sizes = [2, 32], strides = [1, 1]} : vector<2x128xf32> to vector<2x32xf32>
    %c0_39 = arith.constant 0 : index
    %c0_40 = arith.constant 0 : index
    %212 = vector.load %arg3[%c0_39, %c0_40] : memref<264x128xf32, #tpu.memory_space<vmem>>, vector<128x128xf32>
    %c128 = arith.constant 128 : index
    %c0_41 = arith.constant 0 : index
    %213 = vector.load %arg3[%c128, %c0_41] : memref<264x128xf32, #tpu.memory_space<vmem>>, vector<128x128xf32>
    %c256 = arith.constant 256 : index
    %c0_42 = arith.constant 0 : index
    %214 = vector.load %arg3[%c256, %c0_42] : memref<264x128xf32, #tpu.memory_space<vmem>>, vector<1x128xf32>
    %cst_43 = arith.constant dense<0.000000e+00> : vector<16x128xf32>
    %215 = tpu.matmul %209, %212, %cst_43 {dimension_numbers = #tpu.dot_dimension_numbers<[1], [0], [0], [1], [0, 0, 1, 1], [], []>} : vector<16x128xf32>, vector<128x128xf32>, vector<16x128xf32> -> vector<16x128xf32>
    %216 = vector.broadcast %214 : vector<1x128xf32> to vector<16x128xf32>
    %217 = arith.addf %215, %216 : vector<16x128xf32>
    %218 = vector.extract_strided_slice %217 {offsets = [0, 0], sizes = [2, 128], strides = [1, 1]} : vector<16x128xf32> to vector<2x128xf32>
    %219 = vector.extract_strided_slice %217 {offsets = [2, 0], sizes = [2, 128], strides = [1, 1]} : vector<16x128xf32> to vector<2x128xf32>
    %220 = vector.extract_strided_slice %217 {offsets = [4, 0], sizes = [2, 128], strides = [1, 1]} : vector<16x128xf32> to vector<2x128xf32>
    %221 = vector.extract_strided_slice %217 {offsets = [6, 0], sizes = [2, 128], strides = [1, 1]} : vector<16x128xf32> to vector<2x128xf32>
    %222 = vector.extract_strided_slice %217 {offsets = [8, 0], sizes = [2, 128], strides = [1, 1]} : vector<16x128xf32> to vector<2x128xf32>
    %223 = vector.extract_strided_slice %217 {offsets = [10, 0], sizes = [2, 128], strides = [1, 1]} : vector<16x128xf32> to vector<2x128xf32>
    %224 = vector.extract_strided_slice %217 {offsets = [12, 0], sizes = [2, 128], strides = [1, 1]} : vector<16x128xf32> to vector<2x128xf32>
    %225 = vector.extract_strided_slice %217 {offsets = [14, 0], sizes = [2, 128], strides = [1, 1]} : vector<16x128xf32> to vector<2x128xf32>
    %cst_44 = arith.constant 0.000000e+00 : f32
    %226 = vector.broadcast %cst_44 : f32 to vector<2x128xf32>
    %cst_45 = arith.constant 0.000000e+00 : f32
    %227 = vector.broadcast %cst_45 : f32 to vector<2x128xf32>
    %cst_46 = arith.constant dense<0.000000e+00> : vector<2x128xf32>
    %228 = tpu.matmul %226, %213, %cst_46 {dimension_numbers = #tpu.dot_dimension_numbers<[1], [0], [0], [1], [0, 0, 1, 1], [], []>} : vector<2x128xf32>, vector<128x128xf32>, vector<2x128xf32> -> vector<2x128xf32>
    %229 = arith.addf %218, %228 : vector<2x128xf32>
    %cst_47 = arith.constant 5.000000e-01 : f32
    %230 = vector.broadcast %cst_47 : f32 to vector<2x128xf32>
    %231 = arith.mulf %230, %229 : vector<2x128xf32>
    %232 = math.tanh %231 : vector<2x128xf32>
    %cst_48 = arith.constant 5.000000e-01 : f32
    %233 = vector.broadcast %cst_48 : f32 to vector<2x128xf32>
    %234 = arith.mulf %233, %232 : vector<2x128xf32>
    %cst_49 = arith.constant 5.000000e-01 : f32
    %235 = vector.broadcast %cst_49 : f32 to vector<2x128xf32>
    %236 = arith.addf %234, %235 : vector<2x128xf32>
    %237 = math.tanh %229 : vector<2x128xf32>
    %238 = vector.extract_strided_slice %236 {offsets = [0, 32], sizes = [2, 96], strides = [1, 1]} : vector<2x128xf32> to vector<2x96xf32>
    %239 = vector.extract_strided_slice %236 {offsets = [0, 0], sizes = [2, 32], strides = [1, 1]} : vector<2x128xf32> to vector<2x32xf32>
    %240 = tpu.concatenate %238, %239 in 1 : vector<2x96xf32>, vector<2x32xf32> -> vector<2x128xf32>
    %241 = vector.extract_strided_slice %237 {offsets = [0, 64], sizes = [2, 64], strides = [1, 1]} : vector<2x128xf32> to vector<2x64xf32>
    %242 = vector.extract_strided_slice %237 {offsets = [0, 0], sizes = [2, 64], strides = [1, 1]} : vector<2x128xf32> to vector<2x64xf32>
    %243 = tpu.concatenate %241, %242 in 1 : vector<2x64xf32>, vector<2x64xf32> -> vector<2x128xf32>
    %244 = vector.extract_strided_slice %236 {offsets = [0, 96], sizes = [2, 32], strides = [1, 1]} : vector<2x128xf32> to vector<2x32xf32>
    %245 = vector.extract_strided_slice %236 {offsets = [0, 0], sizes = [2, 96], strides = [1, 1]} : vector<2x128xf32> to vector<2x96xf32>
    %246 = tpu.concatenate %244, %245 in 1 : vector<2x32xf32>, vector<2x96xf32> -> vector<2x128xf32>
    %247 = arith.mulf %240, %227 : vector<2x128xf32>
    %248 = arith.mulf %236, %243 : vector<2x128xf32>
    %249 = arith.addf %247, %248 : vector<2x128xf32>
    %250 = math.tanh %249 : vector<2x128xf32>
    %251 = arith.mulf %246, %250 : vector<2x128xf32>
    %cst_50 = arith.constant dense<0.000000e+00> : vector<2x128xf32>
    %252 = tpu.matmul %251, %213, %cst_50 {dimension_numbers = #tpu.dot_dimension_numbers<[1], [0], [0], [1], [0, 0, 1, 1], [], []>} : vector<2x128xf32>, vector<128x128xf32>, vector<2x128xf32> -> vector<2x128xf32>
    %253 = arith.addf %219, %252 : vector<2x128xf32>
    %cst_51 = arith.constant 5.000000e-01 : f32
    %254 = vector.broadcast %cst_51 : f32 to vector<2x128xf32>
    %255 = arith.mulf %254, %253 : vector<2x128xf32>
    %256 = math.tanh %255 : vector<2x128xf32>
    %cst_52 = arith.constant 5.000000e-01 : f32
    %257 = vector.broadcast %cst_52 : f32 to vector<2x128xf32>
    %258 = arith.mulf %257, %256 : vector<2x128xf32>
    %cst_53 = arith.constant 5.000000e-01 : f32
    %259 = vector.broadcast %cst_53 : f32 to vector<2x128xf32>
    %260 = arith.addf %258, %259 : vector<2x128xf32>
    %261 = math.tanh %253 : vector<2x128xf32>
    %262 = vector.extract_strided_slice %260 {offsets = [0, 32], sizes = [2, 96], strides = [1, 1]} : vector<2x128xf32> to vector<2x96xf32>
    %263 = vector.extract_strided_slice %260 {offsets = [0, 0], sizes = [2, 32], strides = [1, 1]} : vector<2x128xf32> to vector<2x32xf32>
    %264 = tpu.concatenate %262, %263 in 1 : vector<2x96xf32>, vector<2x32xf32> -> vector<2x128xf32>
    %265 = vector.extract_strided_slice %261 {offsets = [0, 64], sizes = [2, 64], strides = [1, 1]} : vector<2x128xf32> to vector<2x64xf32>
    %266 = vector.extract_strided_slice %261 {offsets = [0, 0], sizes = [2, 64], strides = [1, 1]} : vector<2x128xf32> to vector<2x64xf32>
    %267 = tpu.concatenate %265, %266 in 1 : vector<2x64xf32>, vector<2x64xf32> -> vector<2x128xf32>
    %268 = vector.extract_strided_slice %260 {offsets = [0, 96], sizes = [2, 32], strides = [1, 1]} : vector<2x128xf32> to vector<2x32xf32>
    %269 = vector.extract_strided_slice %260 {offsets = [0, 0], sizes = [2, 96], strides = [1, 1]} : vector<2x128xf32> to vector<2x96xf32>
    %270 = tpu.concatenate %268, %269 in 1 : vector<2x32xf32>, vector<2x96xf32> -> vector<2x128xf32>
    %271 = arith.mulf %264, %249 : vector<2x128xf32>
    %272 = arith.mulf %260, %267 : vector<2x128xf32>
    %273 = arith.addf %271, %272 : vector<2x128xf32>
    %274 = math.tanh %273 : vector<2x128xf32>
    %275 = arith.mulf %270, %274 : vector<2x128xf32>
    %cst_54 = arith.constant dense<0.000000e+00> : vector<2x128xf32>
    %276 = tpu.matmul %275, %213, %cst_54 {dimension_numbers = #tpu.dot_dimension_numbers<[1], [0], [0], [1], [0, 0, 1, 1], [], []>} : vector<2x128xf32>, vector<128x128xf32>, vector<2x128xf32> -> vector<2x128xf32>
    %277 = arith.addf %220, %276 : vector<2x128xf32>
    %cst_55 = arith.constant 5.000000e-01 : f32
    %278 = vector.broadcast %cst_55 : f32 to vector<2x128xf32>
    %279 = arith.mulf %278, %277 : vector<2x128xf32>
    %280 = math.tanh %279 : vector<2x128xf32>
    %cst_56 = arith.constant 5.000000e-01 : f32
    %281 = vector.broadcast %cst_56 : f32 to vector<2x128xf32>
    %282 = arith.mulf %281, %280 : vector<2x128xf32>
    %cst_57 = arith.constant 5.000000e-01 : f32
    %283 = vector.broadcast %cst_57 : f32 to vector<2x128xf32>
    %284 = arith.addf %282, %283 : vector<2x128xf32>
    %285 = math.tanh %277 : vector<2x128xf32>
    %286 = vector.extract_strided_slice %284 {offsets = [0, 32], sizes = [2, 96], strides = [1, 1]} : vector<2x128xf32> to vector<2x96xf32>
    %287 = vector.extract_strided_slice %284 {offsets = [0, 0], sizes = [2, 32], strides = [1, 1]} : vector<2x128xf32> to vector<2x32xf32>
    %288 = tpu.concatenate %286, %287 in 1 : vector<2x96xf32>, vector<2x32xf32> -> vector<2x128xf32>
    %289 = vector.extract_strided_slice %285 {offsets = [0, 64], sizes = [2, 64], strides = [1, 1]} : vector<2x128xf32> to vector<2x64xf32>
    %290 = vector.extract_strided_slice %285 {offsets = [0, 0], sizes = [2, 64], strides = [1, 1]} : vector<2x128xf32> to vector<2x64xf32>
    %291 = tpu.concatenate %289, %290 in 1 : vector<2x64xf32>, vector<2x64xf32> -> vector<2x128xf32>
    %292 = vector.extract_strided_slice %284 {offsets = [0, 96], sizes = [2, 32], strides = [1, 1]} : vector<2x128xf32> to vector<2x32xf32>
    %293 = vector.extract_strided_slice %284 {offsets = [0, 0], sizes = [2, 96], strides = [1, 1]} : vector<2x128xf32> to vector<2x96xf32>
    %294 = tpu.concatenate %292, %293 in 1 : vector<2x32xf32>, vector<2x96xf32> -> vector<2x128xf32>
    %295 = arith.mulf %288, %273 : vector<2x128xf32>
    %296 = arith.mulf %284, %291 : vector<2x128xf32>
    %297 = arith.addf %295, %296 : vector<2x128xf32>
    %298 = math.tanh %297 : vector<2x128xf32>
    %299 = arith.mulf %294, %298 : vector<2x128xf32>
    %cst_58 = arith.constant dense<0.000000e+00> : vector<2x128xf32>
    %300 = tpu.matmul %299, %213, %cst_58 {dimension_numbers = #tpu.dot_dimension_numbers<[1], [0], [0], [1], [0, 0, 1, 1], [], []>} : vector<2x128xf32>, vector<128x128xf32>, vector<2x128xf32> -> vector<2x128xf32>
    %301 = arith.addf %221, %300 : vector<2x128xf32>
    %cst_59 = arith.constant 5.000000e-01 : f32
    %302 = vector.broadcast %cst_59 : f32 to vector<2x128xf32>
    %303 = arith.mulf %302, %301 : vector<2x128xf32>
    %304 = math.tanh %303 : vector<2x128xf32>
    %cst_60 = arith.constant 5.000000e-01 : f32
    %305 = vector.broadcast %cst_60 : f32 to vector<2x128xf32>
    %306 = arith.mulf %305, %304 : vector<2x128xf32>
    %cst_61 = arith.constant 5.000000e-01 : f32
    %307 = vector.broadcast %cst_61 : f32 to vector<2x128xf32>
    %308 = arith.addf %306, %307 : vector<2x128xf32>
    %309 = math.tanh %301 : vector<2x128xf32>
    %310 = vector.extract_strided_slice %308 {offsets = [0, 32], sizes = [2, 96], strides = [1, 1]} : vector<2x128xf32> to vector<2x96xf32>
    %311 = vector.extract_strided_slice %308 {offsets = [0, 0], sizes = [2, 32], strides = [1, 1]} : vector<2x128xf32> to vector<2x32xf32>
    %312 = tpu.concatenate %310, %311 in 1 : vector<2x96xf32>, vector<2x32xf32> -> vector<2x128xf32>
    %313 = vector.extract_strided_slice %309 {offsets = [0, 64], sizes = [2, 64], strides = [1, 1]} : vector<2x128xf32> to vector<2x64xf32>
    %314 = vector.extract_strided_slice %309 {offsets = [0, 0], sizes = [2, 64], strides = [1, 1]} : vector<2x128xf32> to vector<2x64xf32>
    %315 = tpu.concatenate %313, %314 in 1 : vector<2x64xf32>, vector<2x64xf32> -> vector<2x128xf32>
    %316 = vector.extract_strided_slice %308 {offsets = [0, 96], sizes = [2, 32], strides = [1, 1]} : vector<2x128xf32> to vector<2x32xf32>
    %317 = vector.extract_strided_slice %308 {offsets = [0, 0], sizes = [2, 96], strides = [1, 1]} : vector<2x128xf32> to vector<2x96xf32>
    %318 = tpu.concatenate %316, %317 in 1 : vector<2x32xf32>, vector<2x96xf32> -> vector<2x128xf32>
    %319 = arith.mulf %312, %297 : vector<2x128xf32>
    %320 = arith.mulf %308, %315 : vector<2x128xf32>
    %321 = arith.addf %319, %320 : vector<2x128xf32>
    %322 = math.tanh %321 : vector<2x128xf32>
    %323 = arith.mulf %318, %322 : vector<2x128xf32>
    %cst_62 = arith.constant dense<0.000000e+00> : vector<2x128xf32>
    %324 = tpu.matmul %323, %213, %cst_62 {dimension_numbers = #tpu.dot_dimension_numbers<[1], [0], [0], [1], [0, 0, 1, 1], [], []>} : vector<2x128xf32>, vector<128x128xf32>, vector<2x128xf32> -> vector<2x128xf32>
    %325 = arith.addf %222, %324 : vector<2x128xf32>
    %cst_63 = arith.constant 5.000000e-01 : f32
    %326 = vector.broadcast %cst_63 : f32 to vector<2x128xf32>
    %327 = arith.mulf %326, %325 : vector<2x128xf32>
    %328 = math.tanh %327 : vector<2x128xf32>
    %cst_64 = arith.constant 5.000000e-01 : f32
    %329 = vector.broadcast %cst_64 : f32 to vector<2x128xf32>
    %330 = arith.mulf %329, %328 : vector<2x128xf32>
    %cst_65 = arith.constant 5.000000e-01 : f32
    %331 = vector.broadcast %cst_65 : f32 to vector<2x128xf32>
    %332 = arith.addf %330, %331 : vector<2x128xf32>
    %333 = math.tanh %325 : vector<2x128xf32>
    %334 = vector.extract_strided_slice %332 {offsets = [0, 32], sizes = [2, 96], strides = [1, 1]} : vector<2x128xf32> to vector<2x96xf32>
    %335 = vector.extract_strided_slice %332 {offsets = [0, 0], sizes = [2, 32], strides = [1, 1]} : vector<2x128xf32> to vector<2x32xf32>
    %336 = tpu.concatenate %334, %335 in 1 : vector<2x96xf32>, vector<2x32xf32> -> vector<2x128xf32>
    %337 = vector.extract_strided_slice %333 {offsets = [0, 64], sizes = [2, 64], strides = [1, 1]} : vector<2x128xf32> to vector<2x64xf32>
    %338 = vector.extract_strided_slice %333 {offsets = [0, 0], sizes = [2, 64], strides = [1, 1]} : vector<2x128xf32> to vector<2x64xf32>
    %339 = tpu.concatenate %337, %338 in 1 : vector<2x64xf32>, vector<2x64xf32> -> vector<2x128xf32>
    %340 = vector.extract_strided_slice %332 {offsets = [0, 96], sizes = [2, 32], strides = [1, 1]} : vector<2x128xf32> to vector<2x32xf32>
    %341 = vector.extract_strided_slice %332 {offsets = [0, 0], sizes = [2, 96], strides = [1, 1]} : vector<2x128xf32> to vector<2x96xf32>
    %342 = tpu.concatenate %340, %341 in 1 : vector<2x32xf32>, vector<2x96xf32> -> vector<2x128xf32>
    %343 = arith.mulf %336, %321 : vector<2x128xf32>
    %344 = arith.mulf %332, %339 : vector<2x128xf32>
    %345 = arith.addf %343, %344 : vector<2x128xf32>
    %346 = math.tanh %345 : vector<2x128xf32>
    %347 = arith.mulf %342, %346 : vector<2x128xf32>
    %cst_66 = arith.constant dense<0.000000e+00> : vector<2x128xf32>
    %348 = tpu.matmul %347, %213, %cst_66 {dimension_numbers = #tpu.dot_dimension_numbers<[1], [0], [0], [1], [0, 0, 1, 1], [], []>} : vector<2x128xf32>, vector<128x128xf32>, vector<2x128xf32> -> vector<2x128xf32>
    %349 = arith.addf %223, %348 : vector<2x128xf32>
    %cst_67 = arith.constant 5.000000e-01 : f32
    %350 = vector.broadcast %cst_67 : f32 to vector<2x128xf32>
    %351 = arith.mulf %350, %349 : vector<2x128xf32>
    %352 = math.tanh %351 : vector<2x128xf32>
    %cst_68 = arith.constant 5.000000e-01 : f32
    %353 = vector.broadcast %cst_68 : f32 to vector<2x128xf32>
    %354 = arith.mulf %353, %352 : vector<2x128xf32>
    %cst_69 = arith.constant 5.000000e-01 : f32
    %355 = vector.broadcast %cst_69 : f32 to vector<2x128xf32>
    %356 = arith.addf %354, %355 : vector<2x128xf32>
    %357 = math.tanh %349 : vector<2x128xf32>
    %358 = vector.extract_strided_slice %356 {offsets = [0, 32], sizes = [2, 96], strides = [1, 1]} : vector<2x128xf32> to vector<2x96xf32>
    %359 = vector.extract_strided_slice %356 {offsets = [0, 0], sizes = [2, 32], strides = [1, 1]} : vector<2x128xf32> to vector<2x32xf32>
    %360 = tpu.concatenate %358, %359 in 1 : vector<2x96xf32>, vector<2x32xf32> -> vector<2x128xf32>
    %361 = vector.extract_strided_slice %357 {offsets = [0, 64], sizes = [2, 64], strides = [1, 1]} : vector<2x128xf32> to vector<2x64xf32>
    %362 = vector.extract_strided_slice %357 {offsets = [0, 0], sizes = [2, 64], strides = [1, 1]} : vector<2x128xf32> to vector<2x64xf32>
    %363 = tpu.concatenate %361, %362 in 1 : vector<2x64xf32>, vector<2x64xf32> -> vector<2x128xf32>
    %364 = vector.extract_strided_slice %356 {offsets = [0, 96], sizes = [2, 32], strides = [1, 1]} : vector<2x128xf32> to vector<2x32xf32>
    %365 = vector.extract_strided_slice %356 {offsets = [0, 0], sizes = [2, 96], strides = [1, 1]} : vector<2x128xf32> to vector<2x96xf32>
    %366 = tpu.concatenate %364, %365 in 1 : vector<2x32xf32>, vector<2x96xf32> -> vector<2x128xf32>
    %367 = arith.mulf %360, %345 : vector<2x128xf32>
    %368 = arith.mulf %356, %363 : vector<2x128xf32>
    %369 = arith.addf %367, %368 : vector<2x128xf32>
    %370 = math.tanh %369 : vector<2x128xf32>
    %371 = arith.mulf %366, %370 : vector<2x128xf32>
    %cst_70 = arith.constant dense<0.000000e+00> : vector<2x128xf32>
    %372 = tpu.matmul %371, %213, %cst_70 {dimension_numbers = #tpu.dot_dimension_numbers<[1], [0], [0], [1], [0, 0, 1, 1], [], []>} : vector<2x128xf32>, vector<128x128xf32>, vector<2x128xf32> -> vector<2x128xf32>
    %373 = arith.addf %224, %372 : vector<2x128xf32>
    %cst_71 = arith.constant 5.000000e-01 : f32
    %374 = vector.broadcast %cst_71 : f32 to vector<2x128xf32>
    %375 = arith.mulf %374, %373 : vector<2x128xf32>
    %376 = math.tanh %375 : vector<2x128xf32>
    %cst_72 = arith.constant 5.000000e-01 : f32
    %377 = vector.broadcast %cst_72 : f32 to vector<2x128xf32>
    %378 = arith.mulf %377, %376 : vector<2x128xf32>
    %cst_73 = arith.constant 5.000000e-01 : f32
    %379 = vector.broadcast %cst_73 : f32 to vector<2x128xf32>
    %380 = arith.addf %378, %379 : vector<2x128xf32>
    %381 = math.tanh %373 : vector<2x128xf32>
    %382 = vector.extract_strided_slice %380 {offsets = [0, 32], sizes = [2, 96], strides = [1, 1]} : vector<2x128xf32> to vector<2x96xf32>
    %383 = vector.extract_strided_slice %380 {offsets = [0, 0], sizes = [2, 32], strides = [1, 1]} : vector<2x128xf32> to vector<2x32xf32>
    %384 = tpu.concatenate %382, %383 in 1 : vector<2x96xf32>, vector<2x32xf32> -> vector<2x128xf32>
    %385 = vector.extract_strided_slice %381 {offsets = [0, 64], sizes = [2, 64], strides = [1, 1]} : vector<2x128xf32> to vector<2x64xf32>
    %386 = vector.extract_strided_slice %381 {offsets = [0, 0], sizes = [2, 64], strides = [1, 1]} : vector<2x128xf32> to vector<2x64xf32>
    %387 = tpu.concatenate %385, %386 in 1 : vector<2x64xf32>, vector<2x64xf32> -> vector<2x128xf32>
    %388 = vector.extract_strided_slice %380 {offsets = [0, 96], sizes = [2, 32], strides = [1, 1]} : vector<2x128xf32> to vector<2x32xf32>
    %389 = vector.extract_strided_slice %380 {offsets = [0, 0], sizes = [2, 96], strides = [1, 1]} : vector<2x128xf32> to vector<2x96xf32>
    %390 = tpu.concatenate %388, %389 in 1 : vector<2x32xf32>, vector<2x96xf32> -> vector<2x128xf32>
    %391 = arith.mulf %384, %369 : vector<2x128xf32>
    %392 = arith.mulf %380, %387 : vector<2x128xf32>
    %393 = arith.addf %391, %392 : vector<2x128xf32>
    %394 = math.tanh %393 : vector<2x128xf32>
    %395 = arith.mulf %390, %394 : vector<2x128xf32>
    %cst_74 = arith.constant dense<0.000000e+00> : vector<2x128xf32>
    %396 = tpu.matmul %395, %213, %cst_74 {dimension_numbers = #tpu.dot_dimension_numbers<[1], [0], [0], [1], [0, 0, 1, 1], [], []>} : vector<2x128xf32>, vector<128x128xf32>, vector<2x128xf32> -> vector<2x128xf32>
    %397 = arith.addf %225, %396 : vector<2x128xf32>
    %cst_75 = arith.constant 5.000000e-01 : f32
    %398 = vector.broadcast %cst_75 : f32 to vector<2x128xf32>
    %399 = arith.mulf %398, %397 : vector<2x128xf32>
    %400 = math.tanh %399 : vector<2x128xf32>
    %cst_76 = arith.constant 5.000000e-01 : f32
    %401 = vector.broadcast %cst_76 : f32 to vector<2x128xf32>
    %402 = arith.mulf %401, %400 : vector<2x128xf32>
    %cst_77 = arith.constant 5.000000e-01 : f32
    %403 = vector.broadcast %cst_77 : f32 to vector<2x128xf32>
    %404 = arith.addf %402, %403 : vector<2x128xf32>
    %405 = math.tanh %397 : vector<2x128xf32>
    %406 = vector.extract_strided_slice %404 {offsets = [0, 32], sizes = [2, 96], strides = [1, 1]} : vector<2x128xf32> to vector<2x96xf32>
    %407 = vector.extract_strided_slice %404 {offsets = [0, 0], sizes = [2, 32], strides = [1, 1]} : vector<2x128xf32> to vector<2x32xf32>
    %408 = tpu.concatenate %406, %407 in 1 : vector<2x96xf32>, vector<2x32xf32> -> vector<2x128xf32>
    %409 = vector.extract_strided_slice %405 {offsets = [0, 64], sizes = [2, 64], strides = [1, 1]} : vector<2x128xf32> to vector<2x64xf32>
    %410 = vector.extract_strided_slice %405 {offsets = [0, 0], sizes = [2, 64], strides = [1, 1]} : vector<2x128xf32> to vector<2x64xf32>
    %411 = tpu.concatenate %409, %410 in 1 : vector<2x64xf32>, vector<2x64xf32> -> vector<2x128xf32>
    %412 = vector.extract_strided_slice %404 {offsets = [0, 96], sizes = [2, 32], strides = [1, 1]} : vector<2x128xf32> to vector<2x32xf32>
    %413 = vector.extract_strided_slice %404 {offsets = [0, 0], sizes = [2, 96], strides = [1, 1]} : vector<2x128xf32> to vector<2x96xf32>
    %414 = tpu.concatenate %412, %413 in 1 : vector<2x32xf32>, vector<2x96xf32> -> vector<2x128xf32>
    %415 = arith.mulf %408, %393 : vector<2x128xf32>
    %416 = arith.mulf %404, %411 : vector<2x128xf32>
    %417 = arith.addf %415, %416 : vector<2x128xf32>
    %418 = math.tanh %417 : vector<2x128xf32>
    %419 = arith.mulf %414, %418 : vector<2x128xf32>
    %420 = tpu.concatenate %251, %275, %299, %323, %347, %371, %395, %419 in 0 : vector<2x128xf32>, vector<2x128xf32>, vector<2x128xf32>, vector<2x128xf32>, vector<2x128xf32>, vector<2x128xf32>, vector<2x128xf32>, vector<2x128xf32> -> vector<16x128xf32>
    %421 = vector.extract_strided_slice %419 {offsets = [0, 0], sizes = [2, 32], strides = [1, 1]} : vector<2x128xf32> to vector<2x32xf32>
    %422 = vector.extract_strided_slice %417 {offsets = [0, 0], sizes = [2, 32], strides = [1, 1]} : vector<2x128xf32> to vector<2x32xf32>
    %423 = vector.shape_cast %210 : vector<2x32xf32> to vector<1x2x32xf32>
    %424 = vector.shape_cast %421 : vector<2x32xf32> to vector<1x2x32xf32>
    %425 = tpu.concatenate %423, %424 in 0 : vector<1x2x32xf32>, vector<1x2x32xf32> -> vector<2x2x32xf32>
    %c0_78 = arith.constant 0 : index
    %c0_79 = arith.constant 0 : index
    %c0_80 = arith.constant 0 : index
    %426 = vector.load %arg6[%c0_78, %c0_79, %c0_80] : memref<2x2x32xf32, #tpu.memory_space<vmem>>, vector<2x2x32xf32>
    tpu.vector_store %arg6[%c0_78, %c0_79, %c0_80], %425 {strides = array<i32>} : memref<2x2x32xf32, #tpu.memory_space<vmem>>, vector<2x2x32xf32>,
    %427 = vector.shape_cast %211 : vector<2x32xf32> to vector<1x2x32xf32>
    %428 = vector.shape_cast %422 : vector<2x32xf32> to vector<1x2x32xf32>
    %429 = tpu.concatenate %427, %428 in 0 : vector<1x2x32xf32>, vector<1x2x32xf32> -> vector<2x2x32xf32>
    %c0_81 = arith.constant 0 : index
    %c0_82 = arith.constant 0 : index
    %c0_83 = arith.constant 0 : index
    %430 = vector.load %arg7[%c0_81, %c0_82, %c0_83] : memref<2x2x32xf32, #tpu.memory_space<vmem>>, vector<2x2x32xf32>
    tpu.vector_store %arg7[%c0_81, %c0_82, %c0_83], %429 {strides = array<i32>} : memref<2x2x32xf32, #tpu.memory_space<vmem>>, vector<2x2x32xf32>,
    %c0_84 = arith.constant 0 : index
    %c0_85 = arith.constant 0 : index
    %431 = vector.load %arg4[%c0_84, %c0_85] : memref<216x32xf32, #tpu.memory_space<vmem>>, vector<128x32xf32>
    %c128_86 = arith.constant 128 : index
    %c0_87 = arith.constant 0 : index
    %432 = vector.load %arg4[%c128_86, %c0_87] : memref<216x32xf32, #tpu.memory_space<vmem>>, vector<1x32xf32>
    %c136 = arith.constant 136 : index
    %c0_88 = arith.constant 0 : index
    %433 = vector.load %arg4[%c136, %c0_88] : memref<216x32xf32, #tpu.memory_space<vmem>>, vector<32x32xf32>
    %c168 = arith.constant 168 : index
    %c0_89 = arith.constant 0 : index
    %434 = vector.load %arg4[%c168, %c0_89] : memref<216x32xf32, #tpu.memory_space<vmem>>, vector<1x32xf32>
    %c176 = arith.constant 176 : index
    %c0_90 = arith.constant 0 : index
    %435 = vector.load %arg4[%c176, %c0_90] : memref<216x32xf32, #tpu.memory_space<vmem>>, vector<32x32xf32>
    %c208 = arith.constant 208 : index
    %c0_91 = arith.constant 0 : index
    %436 = vector.load %arg4[%c208, %c0_91] : memref<216x32xf32, #tpu.memory_space<vmem>>, vector<1x32xf32>
    %cst_92 = arith.constant dense<0.000000e+00> : vector<16x32xf32>
    %437 = tpu.matmul %420, %431, %cst_92 {dimension_numbers = #tpu.dot_dimension_numbers<[1], [0], [0], [1], [0, 0, 1, 1], [], []>} : vector<16x128xf32>, vector<128x32xf32>, vector<16x32xf32> -> vector<16x32xf32>
    %438 = vector.broadcast %432 : vector<1x32xf32> to vector<16x32xf32>
    %439 = arith.addf %437, %438 : vector<16x32xf32>
    %cst_93 = arith.constant 0.000000e+00 : f32
    %440 = vector.broadcast %cst_93 : f32 to vector<16x32xf32>
    %441 = arith.maximumf %439, %440 : vector<16x32xf32>
    %cst_94 = arith.constant dense<0.000000e+00> : vector<16x32xf32>
    %442 = tpu.matmul %441, %433, %cst_94 {dimension_numbers = #tpu.dot_dimension_numbers<[1], [0], [0], [1], [0, 0, 1, 1], [], []>} : vector<16x32xf32>, vector<32x32xf32>, vector<16x32xf32> -> vector<16x32xf32>
    %443 = vector.broadcast %434 : vector<1x32xf32> to vector<16x32xf32>
    %444 = arith.addf %442, %443 : vector<16x32xf32>
    %cst_95 = arith.constant 0.000000e+00 : f32
    %445 = vector.broadcast %cst_95 : f32 to vector<16x32xf32>
    %446 = arith.maximumf %444, %445 : vector<16x32xf32>
    %cst_96 = arith.constant dense<0.000000e+00> : vector<16x32xf32>
    %447 = tpu.matmul %446, %435, %cst_96 {dimension_numbers = #tpu.dot_dimension_numbers<[1], [0], [0], [1], [0, 0, 1, 1], [], []>} : vector<16x32xf32>, vector<32x32xf32>, vector<16x32xf32> -> vector<16x32xf32>
    %448 = vector.broadcast %436 : vector<1x32xf32> to vector<16x32xf32>
    %449 = arith.addf %447, %448 : vector<16x32xf32>
    %450 = vector.extract_strided_slice %449 {offsets = [0, 0], sizes = [16, 2], strides = [1, 1]} : vector<16x32xf32> to vector<16x2xf32>
    %cst_97 = arith.constant dense<0xFF800000> : vector<16xf32>
    %451 = vector.multi_reduction <maximumf>, %450, %cst_97 [1] : vector<16x2xf32> to vector<16xf32>
    %452 = vector.shape_cast %451 : vector<16xf32> to vector<16x1xf32>
    %453 = vector.broadcast %452 : vector<16x1xf32> to vector<16x2xf32>
    %454 = arith.subf %450, %453 : vector<16x2xf32>
    %455 = math.exp %454 : vector<16x2xf32>
    %cst_98 = arith.constant dense<0.000000e+00> : vector<16xf32>
    %456 = vector.multi_reduction <add>, %455, %cst_98 [1] : vector<16x2xf32> to vector<16xf32>
    %457 = vector.shape_cast %456 : vector<16xf32> to vector<16x1xf32>
    %458 = math.log %457 : vector<16x1xf32>
    %459 = arith.addf %458, %452 : vector<16x1xf32>
    %460 = vector.broadcast %459 : vector<16x1xf32> to vector<16x2xf32>
    %461 = arith.subf %450, %460 : vector<16x2xf32>
    %c0_99 = arith.constant 0 : index
    %c0_100 = arith.constant 0 : index
    %462 = vector.load %arg5[%c0_99, %c0_100] : memref<16x2xf32, #tpu.memory_space<vmem>>, vector<16x2xf32>
    tpu.vector_store %arg5[%c0_99, %c0_100], %461 {strides = array<i32>} : memref<16x2xf32, #tpu.memory_space<vmem>>, vector<16x2xf32>,
    return
  }
  func.func @transform_0(%arg0: i32) -> (i32, i32) {
    %c0_i32 = arith.constant 0 : i32
    %c0_i32_0 = arith.constant 0 : i32
    %c0_i32_1 = arith.constant 0 : i32
    return %c0_i32, %c0_i32_0 : i32, i32
  }
  func.func @transform_1(%arg0: i32) -> (i32, i32) {
    %c0_i32 = arith.constant 0 : i32
    %c0_i32_0 = arith.constant 0 : i32
    %c0_i32_1 = arith.constant 0 : i32
    return %c0_i32, %c0_i32_0 : i32, i32
  }
  func.func @transform_2(%arg0: i32) -> (i32, i32) {
    %c0_i32 = arith.constant 0 : i32
    %c0_i32_0 = arith.constant 0 : i32
    %c0_i32_1 = arith.constant 0 : i32
    return %c0_i32, %c0_i32_0 : i32, i32
  }
  func.func @transform_3(%arg0: i32) -> (i32, i32) {
    %c0_i32 = arith.constant 0 : i32
    %c0_i32_0 = arith.constant 0 : i32
    %c0_i32_1 = arith.constant 0 : i32
    return %c0_i32, %c0_i32_0 : i32, i32
  }
  func.func @transform_4(%arg0: i32) -> (i32, i32) {
    %c0_i32 = arith.constant 0 : i32
    %c0_i32_0 = arith.constant 0 : i32
    %c0_i32_1 = arith.constant 0 : i32
    return %c0_i32, %c0_i32_0 : i32, i32
  }
  func.func @transform_5(%arg0: i32) -> (i32, i32, i32) {
    %c0_i32 = arith.constant 0 : i32
    %c0_i32_0 = arith.constant 0 : i32
    %c0_i32_1 = arith.constant 0 : i32
    %c0_i32_2 = arith.constant 0 : i32
    return %c0_i32, %c0_i32_0, %c0_i32_1 : i32, i32, i32
  }
  func.func @transform_6(%arg0: i32) -> (i32, i32, i32) {
    %c0_i32 = arith.constant 0 : i32
    %c0_i32_0 = arith.constant 0 : i32
    %c0_i32_1 = arith.constant 0 : i32
    %c0_i32_2 = arith.constant 0 : i32
    return %c0_i32, %c0_i32_0, %c0_i32_1 : i32, i32, i32
  }
}

</mosaic_0001>

<llo_original>
// kernel: tpu_custom_call.1
$region0: #{tpu_custom_call.1}
  #allocation0 [shape = 'u32[]', space=smem, size = 0x4, offset = 0x4, fixed_abs, tag = 'smem constant byte address 0x4 - core index']
  #allocation1 [shape = 'u32[72,128]{1,0:T(1,128)}', space=vmem, size = 0x9000, scoped, tag = 'internal scratch']
  %s0 = inlined_call_operand.vmem [shape: f32[16,16], index: 0, kind: input, shape index: {}]
  %s1 = inlined_call_operand.hbm [shape: f32[152,128], index: 1, kind: input, shape index: {}]
  %s2 = inlined_call_operand.vmem [shape: f32[264,128], index: 2, kind: input, shape index: {}]
  %s3 = inlined_call_operand.vmem [shape: f32[216,32], index: 3, kind: input, shape index: {}]
  %s4 = inlined_call_operand.vmem [shape: f32[16,2], index: 4, kind: output, shape index: {0}]
  %s5 = inlined_call_operand.hbm [shape: f32[2,2,32], index: 5, kind: output, shape index: {1}]
  %s6 = inlined_call_operand.hbm [shape: f32[2,2,32], index: 6, kind: output, shape index: {2}]
  %7 = xla_tuple %s4, %s5, %s6
  %s8 = sld [smem:[#allocation0]]
  $region46: #{tpu_custom_call.1} parent=0
    _
  %s10 = ssub.s32 1, %s8
  %s11 = scalar_select 0, %s10, %s8
  $region1: #{tpu_custom_call.1} parent=0
    #allocation2 [shape = 'u8[77824]{0}', space=vmem, size = 0x13000, scoped, tag = 'input window, operand 1, single buffered']
    #allocation3 [shape = 's32[1]{0}', space=sflag, size = 0x4, scoped, tag = 'scoped memory for tpu_custom_call.1']
    #allocation4 [shape = 's32[1]{0}', space=sflag, size = 0x4, scoped, tag = 'scoped memory for tpu_custom_call.1']
    #allocation5 [shape = 'u8[2048]{0}', space=vmem, size = 0x800, scoped, tag = 'output window, operand 1, single buffered']
    #allocation6 [shape = 'u8[2048]{0}', space=vmem, size = 0x800, scoped, tag = 'output window, operand 2, single buffered']
    #allocation7 [shape = 's32[1]{0}', space=sflag, size = 0x4, scoped, tag = 'scoped memory for tpu_custom_call.1']
    %12 = vsyncpa [#allocation3], 0
    %13 = vsyncpa [#allocation4], 0
    %14 = vsyncpa [#allocation7], 0
    // Predicated region
    $region2: #{tpu_custom_call.1} parent=1 // pred_check
      _
    $region3: #{tpu_custom_call.1} parent=1 // pred_check_branch
      %16 = sbr.rel (0) target = $region5
    $region4: #{tpu_custom_call.1} parent=1 // pred_region
      _
    $region5: #{tpu_custom_call.1} parent=1 // pred_fallthru
      _
    // Predicated region
    $region6: #{tpu_custom_call.1} parent=1 // pred_check
      _
    $region7: #{tpu_custom_call.1} parent=1 // pred_check_branch
      %18 = sbr.rel (0) target = $region9
    $region8: #{tpu_custom_call.1} parent=1 // pred_region
      %20 = vsyncadd [#allocation3], 0
      %s21 = sshll.u32 %s1, 4
      %s22 = int_to_ptr.hbm [resolvable:$true] %s21
      %s23 = sshll.u32 [#allocation2], 4
      %s24 = int_to_ptr.vmem [resolvable:$true] %s23
      %29 = dma.hbm_to_vmem [thread:$0]  %s22, 2432, %s24, [#allocation3], 128, 128, 8
    $region9: #{tpu_custom_call.1} parent=1 // pred_fallthru
      _
    // Predicated region
    $region10: #{tpu_custom_call.1} parent=1 // pred_check
      _
    $region11: #{tpu_custom_call.1} parent=1 // pred_check_branch
      %31 = sbr.rel (0) target = $region13
    $region12: #{tpu_custom_call.1} parent=1 // pred_region
      _
    $region13: #{tpu_custom_call.1} parent=1 // pred_fallthru
      _
    // Predicated region
    $region14: #{tpu_custom_call.1} parent=1 // pred_check
      _
    $region15: #{tpu_custom_call.1} parent=1 // pred_check_branch
      %33 = sbr.rel (0) target = $region17
    $region16: #{tpu_custom_call.1} parent=1 // pred_region
      _
    $region17: #{tpu_custom_call.1} parent=1 // pred_fallthru
      _
    // Predicated region
    $region18: #{tpu_custom_call.1} parent=1 // pred_check
      _
    $region19: #{tpu_custom_call.1} parent=1 // pred_check_branch
      %35 = sbr.rel (0) target = $region21
    $region20: #{tpu_custom_call.1} parent=1 // pred_region
      %37 = dma.done [#allocation3], 2432
    $region21: #{tpu_custom_call.1} parent=1 // pred_fallthru
      _
    %v38 = vld [vmem:[%s0] sm:$0xff]
    %v39 = vld [vmem:[%s0 + $0x8] sm:$0xff]
    %v40 = vld [vmem:[#allocation2] sm:$0xff]
    %v41 = vld [vmem:[#allocation2 + $0x8] sm:$0xff]
    %v42 = vld [vmem:[#allocation2 + $0x10] sm:$0xff]
    %v43 = vld [vmem:[#allocation2 + $0x18] sm:$0xff]
    %v44 = vld [vmem:[#allocation2 + $0x20] sm:$0xff]
    %v45 = vld [vmem:[#allocation2 + $0x28] sm:$0xff]
    %v46 = vld [vmem:[#allocation2 + $0x30] sm:$0xff]
    %v47 = vld [vmem:[#allocation2 + $0x38] sm:$0xff]
    %v48 = vld [vmem:[#allocation2 + $0x40] sm:$0xff]
    %v49 = vld [vmem:[#allocation2 + $0x48] sm:$0xff]
    %v50 = vld [vmem:[#allocation2 + $0x50] sm:$0xff]
    %v51 = vld [vmem:[#allocation2 + $0x58] sm:$0xff]
    %v52 = vld [vmem:[#allocation2 + $0x60] sm:$0xff]
    %v53 = vld [vmem:[#allocation2 + $0x68] sm:$0xff]
    %v54 = vld [vmem:[#allocation2 + $0x70] sm:$0xff]
    %v55 = vld [vmem:[#allocation2 + $0x78] sm:$0xff]
    %v56 = vld [vmem:[#allocation2 + $0x80] sm:$0xff]
    %v57 = vld [vmem:[#allocation2 + $0x88] sm:$0xff]
    %v58 = vld [vmem:[#allocation2 + $0x90] sm:$0x1]
    %v59 = vperm.slane %v58, 0
    %vm60 = vcmask 130048
    %v62 = vsel %vm60, %v38, 0
    %v65 = vsel %vm60, %v39, 0
    %67 = vmatpush.msra.mxu0 0.0
    %68 = vmatpush.msra.mxu0 0.0
    %69 = vmatpush.msra.mxu0 0.0
    %70 = vmatpush.msra.mxu0 0.0
    %71 = vmatpush.msra.mxu0 0.0
    %72 = vmatpush.msra.mxu0 0.0
    %73 = vmatpush.msra.mxu0 0.0
    %74 = vmatpush.msra.mxu0 0.0
    %75 = vmatpush.msra.mxu0 0.0
    %76 = vmatpush.msra.mxu0 0.0
    %77 = vmatpush.msra.mxu0 0.0
    %78 = vmatpush.msra.mxu0 0.0
    %79 = vmatpush.msra.mxu0 0.0
    %80 = vmatpush.msra.mxu0 0.0
    %81 = vmatpush.msra.mxu0 %v41
    %82 = vmatpush.msra.mxu0 %v40
    %83 = vmatmul.f32.gmra.mxu0 %v62
    %v84 = vpop.f32.mrf.mxu0
    %v85 = vadd.f32 %v59, %v84
    %86 = vmatmul.f32.gmra.mxu0 %v65
    %v87 = vpop.f32.mrf.mxu0
    %v88 = vadd.f32 %v59, %v87
    %89 = vdwg.mxu0
    %90 = vmatpush.msra.mxu0 %v57
    %91 = vmatpush.msra.mxu0 %v56
    %92 = vmatpush.msra.mxu0 %v55
    %93 = vmatpush.msra.mxu0 %v54
    %94 = vmatpush.msra.mxu0 %v53
    %95 = vmatpush.msra.mxu0 %v52
    %96 = vmatpush.msra.mxu0 %v51
    %97 = vmatpush.msra.mxu0 %v50
    %98 = vmatpush.msra.mxu0 %v49
    %99 = vmatpush.msra.mxu0 %v48
    %100 = vmatpush.msra.mxu0 %v47
    %101 = vmatpush.msra.mxu0 %v46
    %102 = vmatpush.msra.mxu0 %v45
    %103 = vmatpush.msra.mxu0 %v44
    %104 = vmatpush.msra.mxu0 %v43
    %105 = vmatpush.msra.mxu0 %v42
    %106 = vmatmul.f32.gmra.mxu0 0.0
    %v107 = vpop.f32.mrf.mxu0
    %v108 = vadd.f32 0.0, %v107
    %109 = vdwg.mxu0
    %v110 = vadd.f32 %v85, %v108
    %v111 = vmul.f32 %v110, 0.5
    %v112 = vtanh.pop %v111
    %v113 = vmul.f32 %v112, 0.5
    %v114 = vadd.f32 %v113, 0.5
    %v115 = vtanh.pop %v110
    %117 = vrot.lane.b32.xlu0 %v114, 96
    %v118 = vpop.permute.xlu0 %117
    %121 = vrot.lane.b32.xlu0 %v115, 64
    %v122 = vpop.permute.xlu0 %121
    %124 = vrot.lane.b32.xlu0 %v114, 32
    %v125 = vpop.permute.xlu0 %124
    %vm127 = vcmask 261120
    %v128 = vmul.f32 %v118, 0.0
    %v129 = vmul.f32 %v114, %v122
    %v130 = vadd.f32 %v128, %v129
    %v131 = vtanh.pop %v130
    %v132 = vmul.f32 %v125, %v131
    %133 = vmatpush.msra.mxu0 %v57
    %134 = vmatpush.msra.mxu0 %v56
    %135 = vmatpush.msra.mxu0 %v55
    %136 = vmatpush.msra.mxu0 %v54
    %137 = vmatpush.msra.mxu0 %v53
    %138 = vmatpush.msra.mxu0 %v52
    %139 = vmatpush.msra.mxu0 %v51
    %140 = vmatpush.msra.mxu0 %v50
    %141 = vmatpush.msra.mxu0 %v49
    %142 = vmatpush.msra.mxu0 %v48
    %143 = vmatpush.msra.mxu0 %v47
    %144 = vmatpush.msra.mxu0 %v46
    %145 = vmatpush.msra.mxu0 %v45
    %146 = vmatpush.msra.mxu0 %v44
    %147 = vmatpush.msra.mxu0 %v43
    %148 = vmatpush.msra.mxu0 %v42
    %149 = vmatmul.f32.gmra.mxu0 %v132
    %v150 = vpop.f32.mrf.mxu0
    %v151 = vadd.f32 0.0, %v150
    %152 = vdwg.mxu0
    %v154 = vrot.slane %v151, 6
    %v156 = vadd.f32 %v85, %v154
    %v157 = vmul.f32 %v156, 0.5
    %v158 = vtanh.pop %v157
    %v159 = vmul.f32 %v158, 0.5
    %v160 = vadd.f32 %v159, 0.5
    %v161 = vtanh.pop %v156
    %163 = vrot.lane.b32.xlu0 %v160, 96
    %v164 = vpop.permute.xlu0 %163
    %167 = vrot.lane.b32.xlu0 %v161, 64
    %v168 = vpop.permute.xlu0 %167
    %170 = vrot.lane.b32.xlu0 %v160, 32
    %v171 = vpop.permute.xlu0 %170
    %v174 = vrot.slane %v130, 6
    %v176 = vmul.f32 %v164, %v174
    %v177 = vmul.f32 %v160, %v168
    %v178 = vadd.f32 %v176, %v177
    %v179 = vtanh.pop %v178
    %v180 = vmul.f32 %v171, %v179
    %v182 = vrot.slane %v180, 2
    %184 = vmatpush.msra.mxu0 %v57
    %185 = vmatpush.msra.mxu0 %v56
    %186 = vmatpush.msra.mxu0 %v55
    %187 = vmatpush.msra.mxu0 %v54
    %188 = vmatpush.msra.mxu0 %v53
    %189 = vmatpush.msra.mxu0 %v52
    %190 = vmatpush.msra.mxu0 %v51
    %191 = vmatpush.msra.mxu0 %v50
    %192 = vmatpush.msra.mxu0 %v49
    %193 = vmatpush.msra.mxu0 %v48
    %194 = vmatpush.msra.mxu0 %v47
    %195 = vmatpush.msra.mxu0 %v46
    %196 = vmatpush.msra.mxu0 %v45
    %197 = vmatpush.msra.mxu0 %v44
    %198 = vmatpush.msra.mxu0 %v43
    %199 = vmatpush.msra.mxu0 %v42
    %200 = vmatmul.f32.gmra.mxu0 %v182
    %v201 = vpop.f32.mrf.mxu0
    %v202 = vadd.f32 0.0, %v201
    %203 = vdwg.mxu0
    %v205 = vrot.slane %v202, 4
    %v207 = vadd.f32 %v85, %v205
    %v208 = vmul.f32 %v207, 0.5
    %v209 = vtanh.pop %v208
    %v210 = vmul.f32 %v209, 0.5
    %v211 = vadd.f32 %v210, 0.5
    %v212 = vtanh.pop %v207
    %214 = vrot.lane.b32.xlu0 %v211, 96
    %v215 = vpop.permute.xlu0 %214
    %218 = vrot.lane.b32.xlu0 %v212, 64
    %v219 = vpop.permute.xlu0 %218
    %221 = vrot.lane.b32.xlu0 %v211, 32
    %v222 = vpop.permute.xlu0 %221
    %v225 = vrot.slane %v178, 6
    %v227 = vmul.f32 %v215, %v225
    %v228 = vmul.f32 %v211, %v219
    %v229 = vadd.f32 %v227, %v228
    %v230 = vtanh.pop %v229
    %v231 = vmul.f32 %v222, %v230
    %v233 = vrot.slane %v231, 4
    %235 = vmatpush.msra.mxu0 %v57
    %236 = vmatpush.msra.mxu0 %v56
    %237 = vmatpush.msra.mxu0 %v55
    %238 = vmatpush.msra.mxu0 %v54
    %239 = vmatpush.msra.mxu0 %v53
    %240 = vmatpush.msra.mxu0 %v52
    %241 = vmatpush.msra.mxu0 %v51
    %242 = vmatpush.msra.mxu0 %v50
    %243 = vmatpush.msra.mxu0 %v49
    %244 = vmatpush.msra.mxu0 %v48
    %245 = vmatpush.msra.mxu0 %v47
    %246 = vmatpush.msra.mxu0 %v46
    %247 = vmatpush.msra.mxu0 %v45
    %248 = vmatpush.msra.mxu0 %v44
    %249 = vmatpush.msra.mxu0 %v43
    %250 = vmatpush.msra.mxu0 %v42
    %251 = vmatmul.f32.gmra.mxu0 %v233
    %v252 = vpop.f32.mrf.mxu0
    %v253 = vadd.f32 0.0, %v252
    %254 = vdwg.mxu0
    %v256 = vrot.slane %v253, 2
    %v258 = vadd.f32 %v85, %v256
    %v259 = vmul.f32 %v258, 0.5
    %v260 = vtanh.pop %v259
    %v261 = vmul.f32 %v260, 0.5
    %v262 = vadd.f32 %v261, 0.5
    %v263 = vtanh.pop %v258
    %265 = vrot.lane.b32.xlu0 %v262, 96
    %v266 = vpop.permute.xlu0 %265
    %269 = vrot.lane.b32.xlu0 %v263, 64
    %v270 = vpop.permute.xlu0 %269
    %272 = vrot.lane.b32.xlu0 %v262, 32
    %v273 = vpop.permute.xlu0 %272
    %v276 = vrot.slane %v229, 6
    %v278 = vmul.f32 %v266, %v276
    %v279 = vmul.f32 %v262, %v270
    %v280 = vadd.f32 %v278, %v279
    %v281 = vtanh.pop %v280
    %v282 = vmul.f32 %v273, %v281
    %v284 = vrot.slane %v282, 6
    %286 = vmatpush.msra.mxu0 %v57
    %287 = vmatpush.msra.mxu0 %v56
    %288 = vmatpush.msra.mxu0 %v55
    %289 = vmatpush.msra.mxu0 %v54
    %290 = vmatpush.msra.mxu0 %v53
    %291 = vmatpush.msra.mxu0 %v52
    %292 = vmatpush.msra.mxu0 %v51
    %293 = vmatpush.msra.mxu0 %v50
    %294 = vmatpush.msra.mxu0 %v49
    %295 = vmatpush.msra.mxu0 %v48
    %296 = vmatpush.msra.mxu0 %v47
    %297 = vmatpush.msra.mxu0 %v46
    %298 = vmatpush.msra.mxu0 %v45
    %299 = vmatpush.msra.mxu0 %v44
    %300 = vmatpush.msra.mxu0 %v43
    %301 = vmatpush.msra.mxu0 %v42
    %302 = vmatmul.f32.gmra.mxu0 %v284
    %v303 = vpop.f32.mrf.mxu0
    %v304 = vadd.f32 0.0, %v303
    %305 = vdwg.mxu0
    %v306 = vadd.f32 %v88, %v304
    %v307 = vmul.f32 %v306, 0.5
    %v308 = vtanh.pop %v307
    %v309 = vmul.f32 %v308, 0.5
    %v310 = vadd.f32 %v309, 0.5
    %v311 = vtanh.pop %v306
    %313 = vrot.lane.b32.xlu0 %v310, 96
    %v314 = vpop.permute.xlu0 %313
    %317 = vrot.lane.b32.xlu0 %v311, 64
    %v318 = vpop.permute.xlu0 %317
    %320 = vrot.lane.b32.xlu0 %v310, 32
    %v321 = vpop.permute.xlu0 %320
    %v324 = vrot.slane %v280, 6
    %v326 = vmul.f32 %v314, %v324
    %v327 = vmul.f32 %v310, %v318
    %v328 = vadd.f32 %v326, %v327
    %v329 = vtanh.pop %v328
    %v330 = vmul.f32 %v321, %v329
    %331 = vmatpush.msra.mxu0 %v57
    %332 = vmatpush.msra.mxu0 %v56
    %333 = vmatpush.msra.mxu0 %v55
    %334 = vmatpush.msra.mxu0 %v54
    %335 = vmatpush.msra.mxu0 %v53
    %336 = vmatpush.msra.mxu0 %v52
    %337 = vmatpush.msra.mxu0 %v51
    %338 = vmatpush.msra.mxu0 %v50
    %339 = vmatpush.msra.mxu0 %v49
    %340 = vmatpush.msra.mxu0 %v48
    %341 = vmatpush.msra.mxu0 %v47
    %342 = vmatpush.msra.mxu0 %v46
    %343 = vmatpush.msra.mxu0 %v45
    %344 = vmatpush.msra.mxu0 %v44
    %345 = vmatpush.msra.mxu0 %v43
    %346 = vmatpush.msra.mxu0 %v42
    %347 = vmatmul.f32.gmra.mxu0 %v330
    %v348 = vpop.f32.mrf.mxu0
    %v349 = vadd.f32 0.0, %v348
    %350 = vdwg.mxu0
    %v352 = vrot.slane %v349, 6
    %v354 = vadd.f32 %v88, %v352
    %v355 = vmul.f32 %v354, 0.5
    %v356 = vtanh.pop %v355
    %v357 = vmul.f32 %v356, 0.5
    %v358 = vadd.f32 %v357, 0.5
    %v359 = vtanh.pop %v354
    %361 = vrot.lane.b32.xlu0 %v358, 96
    %v362 = vpop.permute.xlu0 %361
    %365 = vrot.lane.b32.xlu0 %v359, 64
    %v366 = vpop.permute.xlu0 %365
    %368 = vrot.lane.b32.xlu0 %v358, 32
    %v369 = vpop.permute.xlu0 %368
    %v372 = vrot.slane %v328, 6
    %v374 = vmul.f32 %v362, %v372
    %v375 = vmul.f32 %v358, %v366
    %v376 = vadd.f32 %v374, %v375
    %v377 = vtanh.pop %v376
    %v378 = vmul.f32 %v369, %v377
    %v380 = vrot.slane %v378, 2
    %382 = vmatpush.msra.mxu0 %v57
    %383 = vmatpush.msra.mxu0 %v56
    %384 = vmatpush.msra.mxu0 %v55
    %385 = vmatpush.msra.mxu0 %v54
    %386 = vmatpush.msra.mxu0 %v53
    %387 = vmatpush.msra.mxu0 %v52
    %388 = vmatpush.msra.mxu0 %v51
    %389 = vmatpush.msra.mxu0 %v50
    %390 = vmatpush.msra.mxu0 %v49
    %391 = vmatpush.msra.mxu0 %v48
    %392 = vmatpush.msra.mxu0 %v47
    %393 = vmatpush.msra.mxu0 %v46
    %394 = vmatpush.msra.mxu0 %v45
    %395 = vmatpush.msra.mxu0 %v44
    %396 = vmatpush.msra.mxu0 %v43
    %397 = vmatpush.msra.mxu0 %v42
    %398 = vmatmul.f32.gmra.mxu0 %v380
    %v399 = vpop.f32.mrf.mxu0
    %v400 = vadd.f32 0.0, %v399
    %401 = vdwg.mxu0
    %v403 = vrot.slane %v400, 4
    %v405 = vadd.f32 %v88, %v403
    %v406 = vmul.f32 %v405, 0.5
    %v407 = vtanh.pop %v406
    %v408 = vmul.f32 %v407, 0.5
    %v409 = vadd.f32 %v408, 0.5
    %v410 = vtanh.pop %v405
    %412 = vrot.lane.b32.xlu0 %v409, 96
    %v413 = vpop.permute.xlu0 %412
    %416 = vrot.lane.b32.xlu0 %v410, 64
    %v417 = vpop.permute.xlu0 %416
    %419 = vrot.lane.b32.xlu0 %v409, 32
    %v420 = vpop.permute.xlu0 %419
    %v423 = vrot.slane %v376, 6
    %v425 = vmul.f32 %v413, %v423
    %v426 = vmul.f32 %v409, %v417
    %v427 = vadd.f32 %v425, %v426
    %v428 = vtanh.pop %v427
    %v429 = vmul.f32 %v420, %v428
    %v431 = vrot.slane %v429, 4
    %433 = vmatpush.msra.mxu0 %v57
    %434 = vmatpush.msra.mxu0 %v56
    %435 = vmatpush.msra.mxu0 %v55
    %436 = vmatpush.msra.mxu0 %v54
    %437 = vmatpush.msra.mxu0 %v53
    %438 = vmatpush.msra.mxu0 %v52
    %439 = vmatpush.msra.mxu0 %v51
    %440 = vmatpush.msra.mxu0 %v50
    %441 = vmatpush.msra.mxu0 %v49
    %442 = vmatpush.msra.mxu0 %v48
    %443 = vmatpush.msra.mxu0 %v47
    %444 = vmatpush.msra.mxu0 %v46
    %445 = vmatpush.msra.mxu0 %v45
    %446 = vmatpush.msra.mxu0 %v44
    %447 = vmatpush.msra.mxu0 %v43
    %448 = vmatpush.msra.mxu0 %v42
    %449 = vmatmul.f32.gmra.mxu0 %v431
    %v450 = vpop.f32.mrf.mxu0
    %v451 = vadd.f32 0.0, %v450
    %452 = vdwg.mxu0
    %v454 = vrot.slane %v451, 2
    %v456 = vadd.f32 %v88, %v454
    %v457 = vmul.f32 %v456, 0.5
    %v458 = vtanh.pop %v457
    %v459 = vmul.f32 %v458, 0.5
    %v460 = vadd.f32 %v459, 0.5
    %v461 = vtanh.pop %v456
    %463 = vrot.lane.b32.xlu0 %v460, 96
    %v464 = vpop.permute.xlu0 %463
    %467 = vrot.lane.b32.xlu0 %v461, 64
    %v468 = vpop.permute.xlu0 %467
    %470 = vrot.lane.b32.xlu0 %v460, 32
    %v471 = vpop.permute.xlu0 %470
    %v474 = vrot.slane %v427, 6
    %v476 = vmul.f32 %v464, %v474
    %v477 = vmul.f32 %v460, %v468
    %v478 = vadd.f32 %v476, %v477
    %v479 = vtanh.pop %v478
    %v480 = vmul.f32 %v471, %v479
    %vm481 = vcmask 1041408
    %v482 = vsel %vm481, %v132, %v180
    %vm483 = vcmask 1043456
    %v484 = vsel %vm483, %v482, %v231
    %vm485 = vcmask 1045504
    %v486 = vsel %vm485, %v484, %v282
    %v487 = vsel %vm481, %v330, %v378
    %v488 = vsel %vm483, %v487, %v429
    %v489 = vsel %vm485, %v488, %v480
    %v490 = vld [vmem:[%s2] sm:$0xff]
    %v491 = vld [vmem:[%s2 + $0x8] sm:$0xff]
    %v492 = vld [vmem:[%s2 + $0x10] sm:$0xff]
    %v493 = vld [vmem:[%s2 + $0x18] sm:$0xff]
    %v494 = vld [vmem:[%s2 + $0x20] sm:$0xff]
    %v495 = vld [vmem:[%s2 + $0x28] sm:$0xff]
    %v496 = vld [vmem:[%s2 + $0x30] sm:$0xff]
    %v497 = vld [vmem:[%s2 + $0x38] sm:$0xff]
    %v498 = vld [vmem:[%s2 + $0x40] sm:$0xff]
    %v499 = vld [vmem:[%s2 + $0x48] sm:$0xff]
    %v500 = vld [vmem:[%s2 + $0x50] sm:$0xff]
    %v501 = vld [vmem:[%s2 + $0x58] sm:$0xff]
    %v502 = vld [vmem:[%s2 + $0x60] sm:$0xff]
    %v503 = vld [vmem:[%s2 + $0x68] sm:$0xff]
    %v504 = vld [vmem:[%s2 + $0x70] sm:$0xff]
    %v505 = vld [vmem:[%s2 + $0x78] sm:$0xff]
    %v506 = vld [vmem:[%s2 + $0x80] sm:$0xff]
    %v507 = vld [vmem:[%s2 + $0x88] sm:$0xff]
    %v508 = vld [vmem:[%s2 + $0x90] sm:$0xff]
    %v509 = vld [vmem:[%s2 + $0x98] sm:$0xff]
    %v510 = vld [vmem:[%s2 + $0xa0] sm:$0xff]
    %v511 = vld [vmem:[%s2 + $0xa8] sm:$0xff]
    %v512 = vld [vmem:[%s2 + $0xb0] sm:$0xff]
    %v513 = vld [vmem:[%s2 + $0xb8] sm:$0xff]
    %v514 = vld [vmem:[%s2 + $0xc0] sm:$0xff]
    %v515 = vld [vmem:[%s2 + $0xc8] sm:$0xff]
    %v516 = vld [vmem:[%s2 + $0xd0] sm:$0xff]
    %v517 = vld [vmem:[%s2 + $0xd8] sm:$0xff]
    %v518 = vld [vmem:[%s2 + $0xe0] sm:$0xff]
    %v519 = vld [vmem:[%s2 + $0xe8] sm:$0xff]
    %v520 = vld [vmem:[%s2 + $0xf0] sm:$0xff]
    %v521 = vld [vmem:[%s2 + $0xf8] sm:$0xff]
    %v522 = vld [vmem:[%s2 + $0x100] sm:$0x1]
    %v523 = vperm.slane %v522, 0
    %524 = vmatpush.msra.mxu0 %v505
    %525 = vmatpush.msra.mxu0 %v504
    %526 = vmatpush.msra.mxu0 %v503
    %527 = vmatpush.msra.mxu0 %v502
    %528 = vmatpush.msra.mxu0 %v501
    %529 = vmatpush.msra.mxu0 %v500
    %530 = vmatpush.msra.mxu0 %v499
    %531 = vmatpush.msra.mxu0 %v498
    %532 = vmatpush.msra.mxu0 %v497
    %533 = vmatpush.msra.mxu0 %v496
    %534 = vmatpush.msra.mxu0 %v495
    %535 = vmatpush.msra.mxu0 %v494
    %536 = vmatpush.msra.mxu0 %v493
    %537 = vmatpush.msra.mxu0 %v492
    %538 = vmatpush.msra.mxu0 %v491
    %539 = vmatpush.msra.mxu0 %v490
    %540 = vmatmul.f32.gmra.mxu0 %v486
    %v541 = vpop.f32.mrf.mxu0
    %v542 = vadd.f32 %v523, %v541
    %543 = vmatmul.f32.gmra.mxu0 %v489
    %v544 = vpop.f32.mrf.mxu0
    %v545 = vadd.f32 %v523, %v544
    %546 = vdwg.mxu0
    %547 = vmatpush.msra.mxu0 %v521
    %548 = vmatpush.msra.mxu0 %v520
    %549 = vmatpush.msra.mxu0 %v519
    %550 = vmatpush.msra.mxu0 %v518
    %551 = vmatpush.msra.mxu0 %v517
    %552 = vmatpush.msra.mxu0 %v516
    %553 = vmatpush.msra.mxu0 %v515
    %554 = vmatpush.msra.mxu0 %v514
    %555 = vmatpush.msra.mxu0 %v513
    %556 = vmatpush.msra.mxu0 %v512
    %557 = vmatpush.msra.mxu0 %v511
    %558 = vmatpush.msra.mxu0 %v510
    %559 = vmatpush.msra.mxu0 %v509
    %560 = vmatpush.msra.mxu0 %v508
    %561 = vmatpush.msra.mxu0 %v507
    %562 = vmatpush.msra.mxu0 %v506
    %563 = vmatmul.f32.gmra.mxu0 0.0
    %v564 = vpop.f32.mrf.mxu0
    %v565 = vadd.f32 0.0, %v564
    %566 = vdwg.mxu0
    %v567 = vadd.f32 %v542, %v565
    %v568 = vmul.f32 %v567, 0.5
    %v569 = vtanh.pop %v568
    %v570 = vmul.f32 %v569, 0.5
    %v571 = vadd.f32 %v570, 0.5
    %v572 = vtanh.pop %v567
    %574 = vrot.lane.b32.xlu0 %v571, 96
    %v575 = vpop.permute.xlu0 %574
    %578 = vrot.lane.b32.xlu0 %v572, 64
    %v579 = vpop.permute.xlu0 %578
    %581 = vrot.lane.b32.xlu0 %v571, 32
    %v582 = vpop.permute.xlu0 %581
    %v584 = vmul.f32 %v575, 0.0
    %v585 = vmul.f32 %v571, %v579
    %v586 = vadd.f32 %v584, %v585
    %v587 = vtanh.pop %v586
    %v588 = vmul.f32 %v582, %v587
    %589 = vmatpush.msra.mxu0 %v521
    %590 = vmatpush.msra.mxu0 %v520
    %591 = vmatpush.msra.mxu0 %v519
    %592 = vmatpush.msra.mxu0 %v518
    %593 = vmatpush.msra.mxu0 %v517
    %594 = vmatpush.msra.mxu0 %v516
    %595 = vmatpush.msra.mxu0 %v515
    %596 = vmatpush.msra.mxu0 %v514
    %597 = vmatpush.msra.mxu0 %v513
    %598 = vmatpush.msra.mxu0 %v512
    %599 = vmatpush.msra.mxu0 %v511
    %600 = vmatpush.msra.mxu0 %v510
    %601 = vmatpush.msra.mxu0 %v509
    %602 = vmatpush.msra.mxu0 %v508
    %603 = vmatpush.msra.mxu0 %v507
    %604 = vmatpush.msra.mxu0 %v506
    %605 = vmatmul.f32.gmra.mxu0 %v588
    %v606 = vpop.f32.mrf.mxu0
    %v607 = vadd.f32 0.0, %v606
    %608 = vdwg.mxu0
    %v610 = vrot.slane %v607, 6
    %v612 = vadd.f32 %v542, %v610
    %v613 = vmul.f32 %v612, 0.5
    %v614 = vtanh.pop %v613
    %v615 = vmul.f32 %v614, 0.5
    %v616 = vadd.f32 %v615, 0.5
    %v617 = vtanh.pop %v612
    %619 = vrot.lane.b32.xlu0 %v616, 96
    %v620 = vpop.permute.xlu0 %619
    %623 = vrot.lane.b32.xlu0 %v617, 64
    %v624 = vpop.permute.xlu0 %623
    %626 = vrot.lane.b32.xlu0 %v616, 32
    %v627 = vpop.permute.xlu0 %626
    %v630 = vrot.slane %v586, 6
    %v632 = vmul.f32 %v620, %v630
    %v633 = vmul.f32 %v616, %v624
    %v634 = vadd.f32 %v632, %v633
    %v635 = vtanh.pop %v634
    %v636 = vmul.f32 %v627, %v635
    %v638 = vrot.slane %v636, 2
    %640 = vmatpush.msra.mxu0 %v521
    %641 = vmatpush.msra.mxu0 %v520
    %642 = vmatpush.msra.mxu0 %v519
    %643 = vmatpush.msra.mxu0 %v518
    %644 = vmatpush.msra.mxu0 %v517
    %645 = vmatpush.msra.mxu0 %v516
    %646 = vmatpush.msra.mxu0 %v515
    %647 = vmatpush.msra.mxu0 %v514
    %648 = vmatpush.msra.mxu0 %v513
    %649 = vmatpush.msra.mxu0 %v512
    %650 = vmatpush.msra.mxu0 %v511
    %651 = vmatpush.msra.mxu0 %v510
    %652 = vmatpush.msra.mxu0 %v509
    %653 = vmatpush.msra.mxu0 %v508
    %654 = vmatpush.msra.mxu0 %v507
    %655 = vmatpush.msra.mxu0 %v506
    %656 = vmatmul.f32.gmra.mxu0 %v638
    %v657 = vpop.f32.mrf.mxu0
    %v658 = vadd.f32 0.0, %v657
    %659 = vdwg.mxu0
    %v661 = vrot.slane %v658, 4
    %v663 = vadd.f32 %v542, %v661
    %v664 = vmul.f32 %v663, 0.5
    %v665 = vtanh.pop %v664
    %v666 = vmul.f32 %v665, 0.5
    %v667 = vadd.f32 %v666, 0.5
    %v668 = vtanh.pop %v663
    %670 = vrot.lane.b32.xlu0 %v667, 96
    %v671 = vpop.permute.xlu0 %670
    %674 = vrot.lane.b32.xlu0 %v668, 64
    %v675 = vpop.permute.xlu0 %674
    %677 = vrot.lane.b32.xlu0 %v667, 32
    %v678 = vpop.permute.xlu0 %677
    %v681 = vrot.slane %v634, 6
    %v683 = vmul.f32 %v671, %v681
    %v684 = vmul.f32 %v667, %v675
    %v685 = vadd.f32 %v683, %v684
    %v686 = vtanh.pop %v685
    %v687 = vmul.f32 %v678, %v686
    %v689 = vrot.slane %v687, 4
    %691 = vmatpush.msra.mxu0 %v521
    %692 = vmatpush.msra.mxu0 %v520
    %693 = vmatpush.msra.mxu0 %v519
    %694 = vmatpush.msra.mxu0 %v518
    %695 = vmatpush.msra.mxu0 %v517
    %696 = vmatpush.msra.mxu0 %v516
    %697 = vmatpush.msra.mxu0 %v515
    %698 = vmatpush.msra.mxu0 %v514
    %699 = vmatpush.msra.mxu0 %v513
    %700 = vmatpush.msra.mxu0 %v512
    %701 = vmatpush.msra.mxu0 %v511
    %702 = vmatpush.msra.mxu0 %v510
    %703 = vmatpush.msra.mxu0 %v509
    %704 = vmatpush.msra.mxu0 %v508
    %705 = vmatpush.msra.mxu0 %v507
    %706 = vmatpush.msra.mxu0 %v506
    %707 = vmatmul.f32.gmra.mxu0 %v689
    %v708 = vpop.f32.mrf.mxu0
    %v709 = vadd.f32 0.0, %v708
    %710 = vdwg.mxu0
    %v712 = vrot.slane %v709, 2
    %v714 = vadd.f32 %v542, %v712
    %v715 = vmul.f32 %v714, 0.5
    %v716 = vtanh.pop %v715
    %v717 = vmul.f32 %v716, 0.5
    %v718 = vadd.f32 %v717, 0.5
    %v719 = vtanh.pop %v714
    %721 = vrot.lane.b32.xlu0 %v718, 96
    %v722 = vpop.permute.xlu0 %721
    %725 = vrot.lane.b32.xlu0 %v719, 64
    %v726 = vpop.permute.xlu0 %725
    %728 = vrot.lane.b32.xlu0 %v718, 32
    %v729 = vpop.permute.xlu0 %728
    %v732 = vrot.slane %v685, 6
    %v734 = vmul.f32 %v722, %v732
    %v735 = vmul.f32 %v718, %v726
    %v736 = vadd.f32 %v734, %v735
    %v737 = vtanh.pop %v736
    %v738 = vmul.f32 %v729, %v737
    %v740 = vrot.slane %v738, 6
    %742 = vmatpush.msra.mxu0 %v521
    %743 = vmatpush.msra.mxu0 %v520
    %744 = vmatpush.msra.mxu0 %v519
    %745 = vmatpush.msra.mxu0 %v518
    %746 = vmatpush.msra.mxu0 %v517
    %747 = vmatpush.msra.mxu0 %v516
    %748 = vmatpush.msra.mxu0 %v515
    %749 = vmatpush.msra.mxu0 %v514
    %750 = vmatpush.msra.mxu0 %v513
    %751 = vmatpush.msra.mxu0 %v512
    %752 = vmatpush.msra.mxu0 %v511
    %753 = vmatpush.msra.mxu0 %v510
    %754 = vmatpush.msra.mxu0 %v509
    %755 = vmatpush.msra.mxu0 %v508
    %756 = vmatpush.msra.mxu0 %v507
    %757 = vmatpush.msra.mxu0 %v506
    %758 = vmatmul.f32.gmra.mxu0 %v740
    %v759 = vpop.f32.mrf.mxu0
    %v760 = vadd.f32 0.0, %v759
    %761 = vdwg.mxu0
    %v762 = vadd.f32 %v545, %v760
    %v763 = vmul.f32 %v762, 0.5
    %v764 = vtanh.pop %v763
    %v765 = vmul.f32 %v764, 0.5
    %v766 = vadd.f32 %v765, 0.5
    %v767 = vtanh.pop %v762
    %769 = vrot.lane.b32.xlu0 %v766, 96
    %v770 = vpop.permute.xlu0 %769
    %773 = vrot.lane.b32.xlu0 %v767, 64
    %v774 = vpop.permute.xlu0 %773
    %776 = vrot.lane.b32.xlu0 %v766, 32
    %v777 = vpop.permute.xlu0 %776
    %v780 = vrot.slane %v736, 6
    %v782 = vmul.f32 %v770, %v780
    %v783 = vmul.f32 %v766, %v774
    %v784 = vadd.f32 %v782, %v783
    %v785 = vtanh.pop %v784
    %v786 = vmul.f32 %v777, %v785
    %787 = vmatpush.msra.mxu0 %v521
    %788 = vmatpush.msra.mxu0 %v520
    %789 = vmatpush.msra.mxu0 %v519
    %790 = vmatpush.msra.mxu0 %v518
    %791 = vmatpush.msra.mxu0 %v517
    %792 = vmatpush.msra.mxu0 %v516
    %793 = vmatpush.msra.mxu0 %v515
    %794 = vmatpush.msra.mxu0 %v514
    %795 = vmatpush.msra.mxu0 %v513
    %796 = vmatpush.msra.mxu0 %v512
    %797 = vmatpush.msra.mxu0 %v511
    %798 = vmatpush.msra.mxu0 %v510
    %799 = vmatpush.msra.mxu0 %v509
    %800 = vmatpush.msra.mxu0 %v508
    %801 = vmatpush.msra.mxu0 %v507
    %802 = vmatpush.msra.mxu0 %v506
    %803 = vmatmul.f32.gmra.mxu0 %v786
    %v804 = vpop.f32.mrf.mxu0
    %v805 = vadd.f32 0.0, %v804
    %806 = vdwg.mxu0
    %v808 = vrot.slane %v805, 6
    %v810 = vadd.f32 %v545, %v808
    %v811 = vmul.f32 %v810, 0.5
    %v812 = vtanh.pop %v811
    %v813 = vmul.f32 %v812, 0.5
    %v814 = vadd.f32 %v813, 0.5
    %v815 = vtanh.pop %v810
    %817 = vrot.lane.b32.xlu0 %v814, 96
    %v818 = vpop.permute.xlu0 %817
    %821 = vrot.lane.b32.xlu0 %v815, 64
    %v822 = vpop.permute.xlu0 %821
    %824 = vrot.lane.b32.xlu0 %v814, 32
    %v825 = vpop.permute.xlu0 %824
    %v828 = vrot.slane %v784, 6
    %v830 = vmul.f32 %v818, %v828
    %v831 = vmul.f32 %v814, %v822
    %v832 = vadd.f32 %v830, %v831
    %v833 = vtanh.pop %v832
    %v834 = vmul.f32 %v825, %v833
    %v836 = vrot.slane %v834, 2
    %838 = vmatpush.msra.mxu0 %v521
    %839 = vmatpush.msra.mxu0 %v520
    %840 = vmatpush.msra.mxu0 %v519
    %841 = vmatpush.msra.mxu0 %v518
    %842 = vmatpush.msra.mxu0 %v517
    %843 = vmatpush.msra.mxu0 %v516
    %844 = vmatpush.msra.mxu0 %v515
    %845 = vmatpush.msra.mxu0 %v514
    %846 = vmatpush.msra.mxu0 %v513
    %847 = vmatpush.msra.mxu0 %v512
    %848 = vmatpush.msra.mxu0 %v511
    %849 = vmatpush.msra.mxu0 %v510
    %850 = vmatpush.msra.mxu0 %v509
    %851 = vmatpush.msra.mxu0 %v508
    %852 = vmatpush.msra.mxu0 %v507
    %853 = vmatpush.msra.mxu0 %v506
    %854 = vmatmul.f32.gmra.mxu0 %v836
    %v855 = vpop.f32.mrf.mxu0
    %v856 = vadd.f32 0.0, %v855
    %857 = vdwg.mxu0
    %v859 = vrot.slane %v856, 4
    %v861 = vadd.f32 %v545, %v859
    %v862 = vmul.f32 %v861, 0.5
    %v863 = vtanh.pop %v862
    %v864 = vmul.f32 %v863, 0.5
    %v865 = vadd.f32 %v864, 0.5
    %v866 = vtanh.pop %v861
    %868 = vrot.lane.b32.xlu0 %v865, 96
    %v869 = vpop.permute.xlu0 %868
    %872 = vrot.lane.b32.xlu0 %v866, 64
    %v873 = vpop.permute.xlu0 %872
    %875 = vrot.lane.b32.xlu0 %v865, 32
    %v876 = vpop.permute.xlu0 %875
    %v879 = vrot.slane %v832, 6
    %v881 = vmul.f32 %v869, %v879
    %v882 = vmul.f32 %v865, %v873
    %v883 = vadd.f32 %v881, %v882
    %v884 = vtanh.pop %v883
    %v885 = vmul.f32 %v876, %v884
    %v887 = vrot.slane %v885, 4
    %889 = vmatpush.msra.mxu0 %v521
    %890 = vmatpush.msra.mxu0 %v520
    %891 = vmatpush.msra.mxu0 %v519
    %892 = vmatpush.msra.mxu0 %v518
    %893 = vmatpush.msra.mxu0 %v517
    %894 = vmatpush.msra.mxu0 %v516
    %895 = vmatpush.msra.mxu0 %v515
    %896 = vmatpush.msra.mxu0 %v514
    %897 = vmatpush.msra.mxu0 %v513
    %898 = vmatpush.msra.mxu0 %v512
    %899 = vmatpush.msra.mxu0 %v511
    %900 = vmatpush.msra.mxu0 %v510
    %901 = vmatpush.msra.mxu0 %v509
    %902 = vmatpush.msra.mxu0 %v508
    %903 = vmatpush.msra.mxu0 %v507
    %904 = vmatpush.msra.mxu0 %v506
    %905 = vmatmul.f32.gmra.mxu0 %v887
    %v906 = vpop.f32.mrf.mxu0
    %v907 = vadd.f32 0.0, %v906
    %908 = vdwg.mxu0
    %v910 = vrot.slane %v907, 2
    %v912 = vadd.f32 %v545, %v910
    %v913 = vmul.f32 %v912, 0.5
    %v914 = vtanh.pop %v913
    %v915 = vmul.f32 %v914, 0.5
    %v916 = vadd.f32 %v915, 0.5
    %v917 = vtanh.pop %v912
    %919 = vrot.lane.b32.xlu0 %v916, 96
    %v920 = vpop.permute.xlu0 %919
    %923 = vrot.lane.b32.xlu0 %v917, 64
    %v924 = vpop.permute.xlu0 %923
    %926 = vrot.lane.b32.xlu0 %v916, 32
    %v927 = vpop.permute.xlu0 %926
    %v930 = vrot.slane %v883, 6
    %v932 = vmul.f32 %v920, %v930
    %v933 = vmul.f32 %v916, %v924
    %v934 = vadd.f32 %v932, %v933
    %v935 = vtanh.pop %v934
    %v936 = vmul.f32 %v927, %v935
    %v937 = vsel %vm481, %v588, %v636
    %v938 = vsel %vm483, %v937, %v687
    %v939 = vsel %vm485, %v938, %v738
    %v940 = vsel %vm481, %v786, %v834
    %v941 = vsel %vm483, %v940, %v885
    %v942 = vsel %vm485, %v941, %v936
    %vm943 = vcmask 261126
    %944 = vst.msk [vmem:[#allocation5 - $0x6] sm:$0xc0] %vm943, %v480
    %945 = vst.msk [vmem:[#allocation5 - $0x4] sm:$0xc0] %vm943, %v936
    %946 = vst.msk [vmem:[#allocation6 - $0x6] sm:$0xc0] %vm943, %v478
    %947 = vst.msk [vmem:[#allocation6 - $0x4] sm:$0xc0] %vm943, %v934
    %v948 = vld [vmem:[%s3] sm:$0xff]
    %v949 = vld [vmem:[%s3 + $0x8] sm:$0xff]
    %v950 = vld [vmem:[%s3 + $0x10] sm:$0xff]
    %v951 = vld [vmem:[%s3 + $0x18] sm:$0xff]
    %v952 = vld [vmem:[%s3 + $0x20] sm:$0xff]
    %v953 = vld [vmem:[%s3 + $0x28] sm:$0xff]
    %v954 = vld [vmem:[%s3 + $0x30] sm:$0xff]
    %v955 = vld [vmem:[%s3 + $0x38] sm:$0xff]
    %v956 = vld [vmem:[%s3 + $0x40] sm:$0xff]
    %v957 = vld [vmem:[%s3 + $0x48] sm:$0xff]
    %v958 = vld [vmem:[%s3 + $0x50] sm:$0xff]
    %v959 = vld [vmem:[%s3 + $0x58] sm:$0xff]
    %v960 = vld [vmem:[%s3 + $0x60] sm:$0xff]
    %v961 = vld [vmem:[%s3 + $0x68] sm:$0xff]
    %v962 = vld [vmem:[%s3 + $0x70] sm:$0xff]
    %v963 = vld [vmem:[%s3 + $0x78] sm:$0xff]
    %v964 = vld [vmem:[%s3 + $0x80] sm:$0x1]
    %v965 = vld [vmem:[%s3 + $0x88] sm:$0xff]
    %v966 = vld [vmem:[%s3 + $0x90] sm:$0xff]
    %v967 = vld [vmem:[%s3 + $0x98] sm:$0xff]
    %v968 = vld [vmem:[%s3 + $0xa0] sm:$0xff]
    %v969 = vld [vmem:[%s3 + $0xa8] sm:$0x1]
    %v970 = vld [vmem:[%s3 + $0xb0] sm:$0xff]
    %v971 = vld [vmem:[%s3 + $0xb8] sm:$0xff]
    %v972 = vld [vmem:[%s3 + $0xc0] sm:$0xff]
    %v973 = vld [vmem:[%s3 + $0xc8] sm:$0xff]
    %v974 = vld [vmem:[%s3 + $0xd0] sm:$0x1]
    %v975 = vperm.slane %v964, 0
    %976 = vmatpush.msra.mxu0 %v963
    %977 = vmatpush.msra.mxu0 %v962
    %978 = vmatpush.msra.mxu0 %v961
    %979 = vmatpush.msra.mxu0 %v960
    %980 = vmatpush.msra.mxu0 %v959
    %981 = vmatpush.msra.mxu0 %v958
    %982 = vmatpush.msra.mxu0 %v957
    %983 = vmatpush.msra.mxu0 %v956
    %984 = vmatpush.msra.mxu0 %v955
    %985 = vmatpush.msra.mxu0 %v954
    %986 = vmatpush.msra.mxu0 %v953
    %987 = vmatpush.msra.mxu0 %v952
    %988 = vmatpush.msra.mxu0 %v951
    %989 = vmatpush.msra.mxu0 %v950
    %990 = vmatpush.msra.mxu0 %v949
    %991 = vmatpush.msra.mxu0 %v948
    %992 = vmatmul.f32.gmra.mxu0 %v939
    %v993 = vpop.f32.mrf.mxu0
    %v994 = vadd.f32 %v975, %v993
    %995 = vmatmul.f32.gmra.mxu0 %v942
    %v996 = vpop.f32.mrf.mxu0
    %v997 = vadd.f32 %v975, %v996
    %998 = vdwg.mxu0
    %v999 = vmax.f32 %v994, 0.0
    %v1000 = vmax.f32 %v997, 0.0
    %v1001 = vperm.slane %v969, 0
    %v1003 = vsel %vm127, %v999, 0
    %v1006 = vsel %vm127, %v1000, 0
    %1008 = vmatpush.msra.mxu0 0.0
    %1009 = vmatpush.msra.mxu0 0.0
    %1010 = vmatpush.msra.mxu0 0.0
    %1011 = vmatpush.msra.mxu0 0.0
    %1012 = vmatpush.msra.mxu0 0.0
    %1013 = vmatpush.msra.mxu0 0.0
    %1014 = vmatpush.msra.mxu0 0.0
    %1015 = vmatpush.msra.mxu0 0.0
    %1016 = vmatpush.msra.mxu0 0.0
    %1017 = vmatpush.msra.mxu0 0.0
    %1018 = vmatpush.msra.mxu0 0.0
    %1019 = vmatpush.msra.mxu0 0.0
    %1020 = vmatpush.msra.mxu0 %v968
    %1021 = vmatpush.msra.mxu0 %v967
    %1022 = vmatpush.msra.mxu0 %v966
    %1023 = vmatpush.msra.mxu0 %v965
    %1024 = vmatmul.f32.gmra.mxu0 %v1003
    %v1025 = vpop.f32.mrf.mxu0
    %v1026 = vadd.f32 %v1001, %v1025
    %1027 = vmatmul.f32.gmra.mxu0 %v1006
    %v1028 = vpop.f32.mrf.mxu0
    %v1029 = vadd.f32 %v1001, %v1028
    %1030 = vdwg.mxu0
    %v1031 = vmax.f32 %v1026, 0.0
    %v1032 = vmax.f32 %v1029, 0.0
    %v1033 = vperm.slane %v974, 0
    %v1035 = vsel %vm127, %v1031, 0
    %v1038 = vsel %vm127, %v1032, 0
    %1040 = vmatpush.msra.mxu0 0.0
    %1041 = vmatpush.msra.mxu0 0.0
    %1042 = vmatpush.msra.mxu0 0.0
    %1043 = vmatpush.msra.mxu0 0.0
    %1044 = vmatpush.msra.mxu0 0.0
    %1045 = vmatpush.msra.mxu0 0.0
    %1046 = vmatpush.msra.mxu0 0.0
    %1047 = vmatpush.msra.mxu0 0.0
    %1048 = vmatpush.msra.mxu0 0.0
    %1049 = vmatpush.msra.mxu0 0.0
    %1050 = vmatpush.msra.mxu0 0.0
    %1051 = vmatpush.msra.mxu0 0.0
    %1052 = vmatpush.msra.mxu0 %v973
    %1053 = vmatpush.msra.mxu0 %v972
    %1054 = vmatpush.msra.mxu0 %v971
    %1055 = vmatpush.msra.mxu0 %v970
    %1056 = vmatmul.f32.gmra.mxu0 %v1035
    %v1057 = vpop.f32.mrf.mxu0
    %v1058 = vadd.f32 %v1033, %v1057
    %1059 = vmatmul.f32.gmra.mxu0 %v1038
    %v1060 = vpop.f32.mrf.mxu0
    %v1061 = vadd.f32 %v1033, %v1060
    %1062 = vdwg.mxu0
    %vm1063 = vcmask 15360
    %v1064 = vsel %vm1063, %v1058, -inf
    %1065 = vmax.xlane.f32.xlu0 %v1064
    %v1066 = vpop.xlane.xlu0 %1065
    %v1067 = vsel %vm1063, %v1061, -inf
    %1068 = vmax.xlane.f32.xlu0 %v1067
    %v1069 = vpop.xlane.xlu0 %1068
    %v1070 = vsub.f32 %v1058, %v1066
    %v1071 = vsub.f32 %v1061, %v1069
    %v1072 = vmul.f32 %v1070, 1.442695
    %v1073 = vpow.pop %v1072
    %v1074 = vmul.f32 %v1071, 1.442695
    %v1075 = vpow.pop %v1074
    %v1076 = vsel %vm1063, %v1073, 0.0
    %1077 = vadd.xlane.f32.xlu0 %v1076
    %v1078 = vpop.xlane.xlu0 %1077
    %v1079 = vsel %vm1063, %v1075, 0.0
    %1080 = vadd.xlane.f32.xlu0 %v1079
    %v1081 = vpop.xlane.xlu0 %1080
    %v1082 = vlog2.pop %v1078
    %v1083 = vmul.f32 %v1082, 0.6931472
    %v1084 = vlog2.pop %v1081
    %v1085 = vmul.f32 %v1084, 0.6931472
    %v1086 = vadd.f32 %v1083, %v1066
    %v1087 = vadd.f32 %v1085, %v1069
    %v1088 = vsub.f32 %v1058, %v1086
    %v1089 = vsub.f32 %v1061, %v1087
    %1090 = vst.msk [vmem:[%s4] sm:$0xff] %vm1063, %v1088
    %1091 = vst.msk [vmem:[%s4 + $0x8] sm:$0xff] %vm1063, %v1089
    // Predicated region
    $region22: #{tpu_custom_call.1} parent=1 // pred_check
      _
    $region23: #{tpu_custom_call.1} parent=1 // pred_check_branch
      %1093 = sbr.rel (0) target = $region25
    $region24: #{tpu_custom_call.1} parent=1 // pred_region
      _
    $region25: #{tpu_custom_call.1} parent=1 // pred_fallthru
      _
    // Predicated region
    $region26: #{tpu_custom_call.1} parent=1 // pred_check
      _
    $region27: #{tpu_custom_call.1} parent=1 // pred_check_branch
      %1095 = sbr.rel (0) target = $region29
    $region28: #{tpu_custom_call.1} parent=1 // pred_region
      %1097 = vsyncadd [#allocation4], 0
      %s1098 = sshll.u32 [#allocation5], 4
      %s1099 = int_to_ptr.vmem [resolvable:$true] %s1098
      %s1100 = sshll.u32 %s5, 4
      %s1101 = int_to_ptr.hbm [resolvable:$true] %s1100
      %1106 = dma.vmem_to_hbm [thread:$0]  %s1099, 64, %s1101, [#allocation4], 32, 32, 2
    $region29: #{tpu_custom_call.1} parent=1 // pred_fallthru
      _
    // Predicated region
    $region30: #{tpu_custom_call.1} parent=1 // pred_check
      _
    $region31: #{tpu_custom_call.1} parent=1 // pred_check_branch
      %1108 = sbr.rel (0) target = $region33
    $region32: #{tpu_custom_call.1} parent=1 // pred_region
      %1110 = vsyncadd [#allocation7], 0
      %s1111 = sshll.u32 [#allocation6], 4
      %s1112 = int_to_ptr.vmem [resolvable:$true] %s1111
      %s1113 = sshll.u32 %s6, 4
      %s1114 = int_to_ptr.hbm [resolvable:$true] %s1113
      %1119 = dma.vmem_to_hbm [thread:$0]  %s1112, 64, %s1114, [#allocation7], 32, 32, 2
    $region33: #{tpu_custom_call.1} parent=1 // pred_fallthru
      _
    // Predicated region
    $region34: #{tpu_custom_call.1} parent=1 // pred_check
      _
    $region35: #{tpu_custom_call.1} parent=1 // pred_check_branch
      %1121 = sbr.rel (0) target = $region37
    $region36: #{tpu_custom_call.1} parent=1 // pred_region
      _
    $region37: #{tpu_custom_call.1} parent=1 // pred_fallthru
      _
    // Predicated region
    $region38: #{tpu_custom_call.1} parent=1 // pred_check
      _
    $region39: #{tpu_custom_call.1} parent=1 // pred_check_branch
      %1123 = sbr.rel (0) target = $region41
    $region40: #{tpu_custom_call.1} parent=1 // pred_region
      %1125 = dma.done [#allocation4], 64
    $region41: #{tpu_custom_call.1} parent=1 // pred_fallthru
      _
    // Predicated region
    $region42: #{tpu_custom_call.1} parent=1 // pred_check
      _
    $region43: #{tpu_custom_call.1} parent=1 // pred_check_branch
      %1127 = sbr.rel (0) target = $region45
    $region44: #{tpu_custom_call.1} parent=1 // pred_region
      %1129 = dma.done [#allocation7], 64
    $region45: #{tpu_custom_call.1} parent=1 // pred_fallthru
      _
    %1130 = vsyncpa [#allocation3], 1
    %1131 = vsyncpa [#allocation4], 1
    %1132 = vsyncpa [#allocation7], 1

</llo_original>
